<compile_context>
chip_gen: v6e
topology: v6e:2x2x1
jax: 0.10.0
libtpu: 0.0.40
codegen_flags: <defaults>
</compile_context>

<pallas_src>
import jax
import jax.numpy as jnp
from jax.experimental import pallas as pl
from jax.experimental.pallas import tpu as pltpu


_LANE = 128           # observed lanes per row
_TARGET_ROWS = 2048   # rows per grid step (~4 MiB HBM traffic / step at Q=3)
_P = 2                # outer "parallel" grid axis (megacore on v7x)
_SENTINEL = 1e30      # finite stand-in for observed NaNs (survives one-hot matmul)
_NAN_THRESH = 1e29    # obs_rep above this => the source observed lane was NaN


def _cdiv(a, b):
    return -(-a // b)


def _round_up(x, m):
    return _cdiv(x, m) * m


def _make_kernel(q_count, width, rb, num_inner, rows, need_mask):
    """Builds the reduction kernel for a fixed (static) geometry."""

    def kernel(obs_ref, mod_ref, acc_ref, rep_ref):
        # obs_ref: (rb, 128)        f32 tile of observed
        # mod_ref: (rb, 128*Q)      f32 tile of modeled (natural layout, q = lane % Q)
        # acc_ref: (1, 2, 1, 128*Q) f32 resident accumulator (0: sum|d|, 1: sum d)
        # rep_ref: (128, 128*Q)     VMEM scratch, one-hot lane-repeat matrix
        r = pl.program_id(1)

        @pl.when(r == 0)
        def _init():
            acc_ref[...] = jnp.zeros_like(acc_ref)
            # One-hot "repeat each observed lane Q times": rep[l, c] = (c // Q == l),
            # built with two iota compares (no HBM read, no pipelined constant input).
            row = jax.lax.broadcasted_iota(jnp.int32, (_LANE, width), 0)
            col = jax.lax.broadcasted_iota(jnp.int32, (_LANE, width), 1)
            onehot = jnp.logical_and(col >= row * q_count,
                                     col < (row + 1) * q_count)
            rep_ref[...] = jnp.where(onehot, 1.0, 0.0).astype(jnp.float32)

        obs = obs_ref[...]
        mod = mod_ref[...]

        # torch.nansum semantics with a single matmul: observed NaNs -> finite
        # sentinel (sentinel * 0 == 0, so other lanes stay exact at HIGHEST
        # precision); after the repeat, lanes > _NAN_THRESH mark repeated NaNs.
        obs_clean = jnp.where(jnp.isnan(obs), _SENTINEL, obs)
        obs_rep = jnp.dot(obs_clean, rep_ref[...],
                          preferred_element_type=jnp.float32,
                          precision=jax.lax.Precision.HIGHEST)

        d = obs_rep - mod
        invalid = jnp.logical_or(jnp.isnan(d), obs_rep > _NAN_THRESH)
        d = jnp.where(invalid, 0.0, d)

        if need_mask:
            # Ragged last block / clamped waste block: rows past the true row
            # count hold unspecified edge-block data -> zero them before summing.
            blk = pl.program_id(0) * num_inner + r
            row_ids = jax.lax.broadcasted_iota(jnp.int32, (rb, width), 0)
            d = jnp.where(row_ids < rows - blk * rb, d, 0.0)

        # Defer cross-lane work: only reduce over rows (lane % Q still tags the
        # quantile), accumulating into the resident output block.
        acc_ref[0, 0] += jnp.sum(jnp.abs(d), axis=0, keepdims=True)
        acc_ref[0, 1] += jnp.sum(d, axis=0, keepdims=True)

    return kernel


def mae_loss(observed, modeled, quantiles=(0.1, 0.5, 0.9), weight=0.0):
    """Pallas implementation of MAELoss.forward(observed, modeled)."""
    modeled = modeled.astype(jnp.float32)
    q_count = modeled.shape[-1]
    assert q_count == len(quantiles)
    width = _LANE * q_count

    # Faithful torch semantics: observed.squeeze(), broadcast against modeled[..., i].
    obs = jnp.squeeze(observed).astype(jnp.float32)
    obs = jnp.broadcast_to(obs, modeled.shape[:-1])

    n = obs.size
    obs_flat = obs.reshape(-1)       # (n,)      free reshape
    mod_flat = modeled.reshape(-1)   # (n * Q,)  free reshape, NO transpose

    rows = n // _LANE                # full 128-lane rows handled by the kernel
    use_kernel = rows >= 8           # tiny inputs: pure JAX is cheaper than a launch
    main = rows * _LANE if use_kernel else 0
    tail_n = n - main                # < 128 elements (or everything, if tiny input)

    abs_q = jnp.zeros((q_count,), jnp.float32)
    sgn_q = jnp.zeros((q_count,), jnp.float32)

    if use_kernel:
        if tail_n:
            # TODO(synk): this prefix slice materializes a copy when N % 128 != 0;
            # a manual-DMA (memory_space=pl.ANY) path could stream it copy-free.
            obs_main = obs_flat[:main]
            mod_main = mod_flat[:main * q_count]
        else:
            obs_main, mod_main = obs_flat, mod_flat      # zero-copy path

        obs2d = obs_main.reshape(rows, _LANE)            # free reshapes (row-major)
        mod2d = mod_main.reshape(rows, width)

        # Grid geometry: rb rows per step, R row blocks split across the
        # "parallel" axis.  No padding: the last block may be partial.
        rb = min(_TARGET_ROWS, _round_up(_cdiv(rows, _P), 8))
        R = _cdiv(rows, rb)
        p_eff = min(_P, R)
        num_inner = _cdiv(R, p_eff)
        waste = p_eff * num_inner - R                    # <= p_eff - 1 duplicate steps
        need_mask = (rows % rb != 0) or (waste > 0)

        if waste:
            def block_index(p, r):
                # Clamp the (fully masked) waste steps onto the last real block.
                return jnp.minimum(p * num_inner + r, R - 1)
        else:
            def block_index(p, r):
                return p * num_inner + r

        kernel = _make_kernel(q_count, width, rb, num_inner, rows, need_mask)

        acc = pl.pallas_call(
            kernel,
            out_shape=jax.ShapeDtypeStruct((p_eff, 2, 1, width), jnp.float32),
            grid_spec=pltpu.PrefetchScalarGridSpec(
                num_scalar_prefetch=0,
                grid=(p_eff, num_inner),
                in_specs=[
                    pl.BlockSpec((rb, _LANE), lambda p, r: (block_index(p, r), 0)),
                    pl.BlockSpec((rb, width), lambda p, r: (block_index(p, r), 0)),
                ],
                out_specs=pl.BlockSpec((1, 2, 1, width),
                                       lambda p, r: (p, 0, 0, 0)),
                scratch_shapes=[pltpu.VMEM((_LANE, width), jnp.float32)],
            ),
            compiler_params=pltpu.CompilerParams(
                dimension_semantics=("parallel", "arbitrary"),
                vmem_limit_bytes=48 * 1024 * 1024,
            ),
        )(obs2d, mod2d)

        # Tiny finalization in plain JAX (a few KB): fold the parallel axis,
        # then lane -> quantile (lane % Q == quantile) via a (128, Q) reshape.
        lane_acc = acc.sum(axis=(0, 2))                  # (2, width)
        abs_q = abs_q + lane_acc[0].reshape(_LANE, q_count).sum(axis=0)
        sgn_q = sgn_q + lane_acc[1].reshape(_LANE, q_count).sum(axis=0)

    if tail_n:
        # Sub-row remainder (< 128 observed elements): pure-JAX epilogue.
        obs_t = obs_flat[main:]
        mod_t = mod_flat[main * q_count:].reshape(tail_n, q_count)
        d_t = obs_t[:, None] - mod_t
        d_t = jnp.where(jnp.isnan(d_t), 0.0, d_t)
        abs_q = abs_q + jnp.sum(jnp.abs(d_t), axis=0)
        sgn_q = sgn_q + jnp.sum(d_t, axis=0)

    total = jnp.float32(0.0)
    for i, q in enumerate(quantiles):
        pin_i = jnp.maximum(q * sgn_q[i], (q - 1.0) * sgn_q[i])
        total = total + abs_q[i] + weight * pin_i
    return total


def _ref_mae_loss(observed, modeled, quantiles=(0.1, 0.5, 0.9), weight=0.0):
    """Pure-JAX reference mirroring the PyTorch code."""
    obs = jnp.squeeze(observed)
    total = jnp.float32(0.0)
    for i, q in enumerate(quantiles):
        d = obs - modeled[..., i]
        mae = jnp.mean(jnp.nansum(jnp.abs(d)))
        s = jnp.nansum(d)
        pin = jnp.mean(jnp.maximum(q * s, (q - 1.0) * s))
        total = total + mae + weight * pin
    return total


if __name__ == "__main__":
    key = jax.random.PRNGKey(0)
    k1, k2, k3, k4 = jax.random.split(key, 4)

    Q = 3

    # Case 1: 128-aligned N (zero-copy streaming path); observed has a trailing
    # singleton dim, exercising the .squeeze().  NaNs on both sides (nansum).
    B, T = 8, 512
    observed = jax.random.normal(k1, (B, T, 1), dtype=jnp.float32)
    modeled = jax.random.normal(k2, (B, T, Q), dtype=jnp.float32)
    observed = observed.at[1, 3, 0].set(jnp.nan)
    modeled = modeled.at[2, 7, 1].set(jnp.nan)

    out_default = jax.block_until_ready(mae_loss(observed, modeled))
    ref_default = _ref_mae_loss(observed, modeled)
    assert jnp.allclose(out_default, ref_default, rtol=1e-4, atol=1e-2), (
        out_default, ref_default)

    # Non-zero weight exercises the pinball-loss path.
    out_w = jax.block_until_ready(mae_loss(observed, modeled, weight=0.5))
    ref_w = _ref_mae_loss(observed, modeled, weight=0.5)
    assert jnp.allclose(out_w, ref_w, rtol=1e-4, atol=1e-2), (out_w, ref_w)

    # Case 2: unaligned N (5*520 = 2600 = 20 full rows + 40-element tail);
    # exercises the in-kernel ragged-row masking and the pure-JAX tail epilogue.
    B2, T2 = 5, 520
    observed2 = jax.random.normal(k3, (B2, T2, 1), dtype=jnp.float32)
    modeled2 = jax.random.normal(k4, (B2, T2, Q), dtype=jnp.float32)
    observed2 = observed2.at[0, 517, 0].set(jnp.nan)   # NaN inside the kernel body
    modeled2 = modeled2.at[4, 519, 2].set(jnp.nan)     # NaN inside the JAX tail

    out2 = jax.block_until_ready(mae_loss(observed2, modeled2, weight=0.25))
    ref2 = _ref_mae_loss(observed2, modeled2, weight=0.25)
    assert jnp.allclose(out2, ref2, rtol=1e-4, atol=1e-2), (out2, ref2)

    print("KERNEL_OK")
</pallas_src>

<mosaic_0001>
module attributes {stable_mosaic.version = 11 : i64} {
  func.func @kernel(%arg0: i32, %arg1: i32, %arg2: memref<16x128xf32, #tpu.memory_space<vmem>>, %arg3: memref<16x384xf32, #tpu.memory_space<vmem>>, %arg4: memref<1x2x1x384xf32, #tpu.memory_space<vmem>>, %arg5: memref<128x384xf32, #tpu.memory_space<vmem>>) attributes {dimension_semantics = [#tpu.dimension_semantics<parallel>, #tpu.dimension_semantics<arbitrary>], iteration_bounds = array<i64: 2, 1>, scalar_prefetch = 0 : i64, scratch_operands = 1 : i64, tpu.core_type = #tpu.core_type<tc>, window_params = [{transform_indices = @transform_0, window_bounds = array<i64: 16, 128>}, {transform_indices = @transform_1, window_bounds = array<i64: 16, 384>}, {transform_indices = @transform_2, window_bounds = array<i64: 1, 2, 1, 384>}]} {
    %c0_i32 = arith.constant 0 : i32
    %0 = arith.cmpi eq, %arg1, %c0_i32 : i32
    %1 = arith.extui %0 : i1 to i32
    %c0_i32_0 = arith.constant 0 : i32
    %2 = arith.cmpi ne, %1, %c0_i32_0 : i32
    scf.if %2 {
      %cst_26 = arith.constant 0.000000e+00 : f32
      %34 = vector.broadcast %cst_26 : f32 to vector<1x2x1x384xf32>
      %c0_27 = arith.constant 0 : index
      %c0_28 = arith.constant 0 : index
      %c0_29 = arith.constant 0 : index
      %c0_30 = arith.constant 0 : index
      %35 = vector.load %arg4[%c0_27, %c0_28, %c0_29, %c0_30] : memref<1x2x1x384xf32, #tpu.memory_space<vmem>>, vector<1x2x1x384xf32>
      tpu.vector_store %arg4[%c0_27, %c0_28, %c0_29, %c0_30], %34 {strides = array<i32>} : memref<1x2x1x384xf32, #tpu.memory_space<vmem>>, vector<1x2x1x384xf32>,
      %36 = tpu.iota {dimensions = array<i32: 0>} : vector<128x384xi32>
      %37 = tpu.iota {dimensions = array<i32: 1>} : vector<128x384xi32>
      %c3_i32 = arith.constant 3 : i32
      %38 = vector.broadcast %c3_i32 : i32 to vector<128x384xi32>
      %39 = arith.muli %36, %38 : vector<128x384xi32>
      %40 = arith.cmpi sge, %37, %39 : vector<128x384xi32>
      %c1_i32 = arith.constant 1 : i32
      %41 = vector.broadcast %c1_i32 : i32 to vector<128x384xi32>
      %42 = arith.addi %36, %41 : vector<128x384xi32>
      %c3_i32_31 = arith.constant 3 : i32
      %43 = vector.broadcast %c3_i32_31 : i32 to vector<128x384xi32>
      %44 = arith.muli %42, %43 : vector<128x384xi32>
      %45 = arith.cmpi slt, %37, %44 : vector<128x384xi32>
      %46 = arith.andi %40, %45 : vector<128x384xi1>
      %cst_32 = arith.constant 1.000000e+00 : f32
      %cst_33 = arith.constant 0.000000e+00 : f32
      %47 = vector.broadcast %cst_32 : f32 to vector<128x384xf32>
      %48 = vector.broadcast %cst_33 : f32 to vector<128x384xf32>
      %49 = arith.select %46, %47, %48 : vector<128x384xi1>, vector<128x384xf32>
      %c0_34 = arith.constant 0 : index
      %c0_35 = arith.constant 0 : index
      %50 = vector.load %arg5[%c0_34, %c0_35] : memref<128x384xf32, #tpu.memory_space<vmem>>, vector<128x384xf32>
      tpu.vector_store %arg5[%c0_34, %c0_35], %49 {strides = array<i32>} : memref<128x384xf32, #tpu.memory_space<vmem>>, vector<128x384xf32>,
    } else {
    }
    %c0 = arith.constant 0 : index
    %c0_1 = arith.constant 0 : index
    %3 = vector.load %arg2[%c0, %c0_1] : memref<16x128xf32, #tpu.memory_space<vmem>>, vector<16x128xf32>
    %c0_2 = arith.constant 0 : index
    %c0_3 = arith.constant 0 : index
    %4 = vector.load %arg3[%c0_2, %c0_3] : memref<16x384xf32, #tpu.memory_space<vmem>>, vector<16x384xf32>
    %5 = arith.cmpf one, %3, %3 : vector<16x128xf32>
    %cst = arith.constant 1.000000e+30 : f32
    %6 = vector.broadcast %cst : f32 to vector<16x128xf32>
    %7 = arith.select %5, %6, %3 : vector<16x128xi1>, vector<16x128xf32>
    %c0_4 = arith.constant 0 : index
    %c0_5 = arith.constant 0 : index
    %8 = vector.load %arg5[%c0_4, %c0_5] : memref<128x384xf32, #tpu.memory_space<vmem>>, vector<128x384xf32>
    %cst_6 = arith.constant dense<0.000000e+00> : vector<16x384xf32>
    %9 = tpu.matmul %7, %8, %cst_6 {dimension_numbers = #tpu.dot_dimension_numbers<[1], [0], [0], [1], [0, 0, 1, 1], [], []>, precision = #tpu.contract_precision<fp32>} : vector<16x128xf32>, vector<128x384xf32>, vector<16x384xf32> -> vector<16x384xf32>
    %10 = arith.subf %9, %4 : vector<16x384xf32>
    %11 = arith.cmpf one, %10, %10 : vector<16x384xf32>
    %cst_7 = arith.constant 1.000000e+29 : f32
    %12 = vector.broadcast %cst_7 : f32 to vector<16x384xf32>
    %13 = arith.cmpf ogt, %9, %12 : vector<16x384xf32>
    %14 = arith.ori %11, %13 : vector<16x384xi1>
    %cst_8 = arith.constant 0.000000e+00 : f32
    %15 = vector.broadcast %cst_8 : f32 to vector<16x384xf32>
    %16 = arith.select %14, %15, %10 : vector<16x384xi1>, vector<16x384xf32>
    %c0_9 = arith.constant 0 : index
    %c0_10 = arith.constant 0 : index
    %c0_11 = arith.constant 0 : index
    %c0_12 = arith.constant 0 : index
    %17 = vector.load %arg4[%c0_9, %c0_10, %c0_11, %c0_12] : memref<1x2x1x384xf32, #tpu.memory_space<vmem>>, vector<1x1x1x384xf32>
    %18 = vector.shape_cast %17 : vector<1x1x1x384xf32> to vector<1x384xf32>
    %19 = math.absf %16 : vector<16x384xf32>
    %cst_13 = arith.constant dense<0.000000e+00> : vector<384xf32>
    %20 = vector.multi_reduction <add>, %19, %cst_13 [0] : vector<16x384xf32> to vector<384xf32>
    %21 = vector.shape_cast %20 : vector<384xf32> to vector<1x384xf32>
    %22 = arith.addf %18, %21 : vector<1x384xf32>
    %c0_14 = arith.constant 0 : index
    %c0_15 = arith.constant 0 : index
    %c0_16 = arith.constant 0 : index
    %c0_17 = arith.constant 0 : index
    %23 = vector.load %arg4[%c0_14, %c0_15, %c0_16, %c0_17] : memref<1x2x1x384xf32, #tpu.memory_space<vmem>>, vector<1x1x1x384xf32>
    %24 = vector.shape_cast %23 : vector<1x1x1x384xf32> to vector<1x384xf32>
    %25 = vector.shape_cast %22 : vector<1x384xf32> to vector<1x1x1x384xf32>
    tpu.vector_store %arg4[%c0_14, %c0_15, %c0_16, %c0_17], %25 {strides = array<i32>} : memref<1x2x1x384xf32, #tpu.memory_space<vmem>>, vector<1x1x1x384xf32>,
    %c0_18 = arith.constant 0 : index
    %c1 = arith.constant 1 : index
    %c0_19 = arith.constant 0 : index
    %c0_20 = arith.constant 0 : index
    %26 = vector.load %arg4[%c0_18, %c1, %c0_19, %c0_20] : memref<1x2x1x384xf32, #tpu.memory_space<vmem>>, vector<1x1x1x384xf32>
    %27 = vector.shape_cast %26 : vector<1x1x1x384xf32> to vector<1x384xf32>
    %cst_21 = arith.constant dense<0.000000e+00> : vector<384xf32>
    %28 = vector.multi_reduction <add>, %16, %cst_21 [0] : vector<16x384xf32> to vector<384xf32>
    %29 = vector.shape_cast %28 : vector<384xf32> to vector<1x384xf32>
    %30 = arith.addf %27, %29 : vector<1x384xf32>
    %c0_22 = arith.constant 0 : index
    %c1_23 = arith.constant 1 : index
    %c0_24 = arith.constant 0 : index
    %c0_25 = arith.constant 0 : index
    %31 = vector.load %arg4[%c0_22, %c1_23, %c0_24, %c0_25] : memref<1x2x1x384xf32, #tpu.memory_space<vmem>>, vector<1x1x1x384xf32>
    %32 = vector.shape_cast %31 : vector<1x1x1x384xf32> to vector<1x384xf32>
    %33 = vector.shape_cast %30 : vector<1x384xf32> to vector<1x1x1x384xf32>
    tpu.vector_store %arg4[%c0_22, %c1_23, %c0_24, %c0_25], %33 {strides = array<i32>} : memref<1x2x1x384xf32, #tpu.memory_space<vmem>>, vector<1x1x1x384xf32>,
    return
  }
  func.func @transform_0(%arg0: i32, %arg1: i32) -> (i32, i32) {
    %c1_i32 = arith.constant 1 : i32
    %0 = arith.muli %arg0, %c1_i32 : i32
    %1 = arith.addi %0, %arg1 : i32
    %c0_i32 = arith.constant 0 : i32
    %c0_i32_0 = arith.constant 0 : i32
    return %1, %c0_i32 : i32, i32
  }
  func.func @transform_1(%arg0: i32, %arg1: i32) -> (i32, i32) {
    %c1_i32 = arith.constant 1 : i32
    %0 = arith.muli %arg0, %c1_i32 : i32
    %1 = arith.addi %0, %arg1 : i32
    %c0_i32 = arith.constant 0 : i32
    %c0_i32_0 = arith.constant 0 : i32
    return %1, %c0_i32 : i32, i32
  }
  func.func @transform_2(%arg0: i32, %arg1: i32) -> (i32, i32, i32, i32) {
    %c0_i32 = arith.constant 0 : i32
    %c0_i32_0 = arith.constant 0 : i32
    %c0_i32_1 = arith.constant 0 : i32
    %c0_i32_2 = arith.constant 0 : i32
    return %arg0, %c0_i32, %c0_i32_0, %c0_i32_1 : i32, i32, i32, i32
  }
}

</mosaic_0001>

<llo_original>
// kernel: tpu_custom_call.1
$region0: #{tpu_custom_call.1}
  #allocation0 [shape = 'u32[]', space=smem, size = 0x4, offset = 0x4, fixed_abs, tag = 'smem constant byte address 0x4 - core index']
  #allocation1 [shape = 'u32[144,128]{1,0:T(1,128)}', space=vmem, size = 0x12000, scoped, tag = 'internal scratch']
  #allocation2 [shape = 'f32[128,384]{1,0:T(8,128)}', space=vmem, size = 0x30000, scoped, tag = 'scratch operand']
  %s0 = inlined_call_operand.hbm [shape: f32[32,128], index: 0, kind: input, shape index: {}]
  %s1 = inlined_call_operand.hbm [shape: f32[32,384], index: 1, kind: input, shape index: {}]
  %s2 = inlined_call_operand.hbm [shape: f32[2,2,1,384], index: 2, kind: output, shape index: {}]
  %s3 = sld [smem:[#allocation0]]
  $region53: #{tpu_custom_call.1} parent=0
    _
  %s5 = ssub.s32 1, %s3
  %s6 = scalar_select 0, %s5, %s3
  $region1: #{tpu_custom_call.1} parent=0
    #allocation3 [shape = 'u8[16384]{0}', space=vmem, size = 0x4000, scoped, tag = 'input window, operand 0']
    #allocation4 [shape = 's32[2]{0}', space=sflag, size = 0x8, scoped, tag = 'scoped memory for tpu_custom_call.1']
    #allocation5 [shape = 's32[2]{0}', space=sflag, size = 0x8, scoped, tag = 'scoped memory for tpu_custom_call.1']
    #allocation6 [shape = 'u8[49152]{0}', space=vmem, size = 0xc000, scoped, tag = 'input window, operand 1']
    #allocation7 [shape = 's32[2]{0}', space=sflag, size = 0x8, scoped, tag = 'scoped memory for tpu_custom_call.1']
    #allocation8 [shape = 'u8[6144]{0}', space=vmem, size = 0x1800, scoped, tag = 'output window, operand 0']
    %7 = vsyncpa [#allocation4], 0
    %s8 = scalar_lea.sflag [#allocation4], 1
    %9 = vsyncpa %s8, 0
    %10 = vsyncpa [#allocation7], 0
    %s11 = scalar_lea.sflag [#allocation7], 1
    %12 = vsyncpa %s11, 0
    %13 = vsyncpa [#allocation5], 0
    %s14 = scalar_lea.sflag [#allocation5], 1
    %15 = vsyncpa %s14, 0
    loop: start=0, step=1, limit=4
    $region2: #{tpu_custom_call.1} parent=1 // loop_pre_header
      _
    $region3: #{tpu_custom_call.1} parent=1 // loop_header
      %s17 = sphi 0, %s21
      %p18 = scmp.ge.s32.totalorder %s17, 4
      %s24 = sphi 0, %s36
      %s25 = sphi 0, %s32
      %s26 = sphi 0, %s24
      %s27 = sphi 0, %s25
      %s28 = sphi 0, %s26
      %s29 = sphi 0, %s27
      %s41 = sphi 0, %s43
      %s44 = sphi 0, %s41
      %s45 = sphi 0, %s44
      %s61 = sphi 0, %s45
      %s69 = sphi 0, %s71
      %s72 = sphi 0, %s69
      %s73 = sphi 0, %s72
      %s89 = sphi 0, %s73
      %s95 = sphi 0, %s97
      %s98 = sphi 0, %s95
      %s99 = sphi 0, %s98
      %s115 = sphi 0, %s99
    $region4: #{tpu_custom_call.1} parent=1 // loop_header_branch
      %20 = sbr.rel (%p18) target = $region8
    $region5: #{tpu_custom_call.1} parent=1 // loop_body
      %s22 = ssub.s32 %s17, 1
      %s23 = ssub.s32 %s17, 2
      %s30 = sadd.s32 1, %s25
      %p31 = scmp.ge.s32.totalorder %s30, 1
      %s32 = scalar_select %p31, 0, %s30
      %s33 = sadd.s32 1, %s24
      %s34 = scalar_select %p31, %s33, %s24
      %p35 = scmp.ge.s32.totalorder %s34, 2
      %s36 = scalar_select %p35, 0, %s34
      %s37 = sadd.s32 %s24, %s25
      %s38 = sadd.s32 %s36, %s32
      %s39 = ssub.s32 %s37, %s38
      %p40 = scmp.eq.s32.totalorder %s39, 0
      %s42 = sadd.s32 %s41, 1
      %s43 = scalar_select %p40, %s41, %s42
      %p46 = pneg %p40
      %p47 = scmp.eq.s32.totalorder %s17, 1
      %p48 = por %p46, %p47
      %p49 = scmp.ne.s32.totalorder %s41, %s44
      %p50 = scmp.eq.s32.totalorder %s17, 0
      %p51 = por %p49, %p50
      %p52 = scmp.ne.s32.totalorder %s41, %s44
      %p53 = scmp.eq.s32.totalorder %s22, 1
      %p54 = por %p52, %p53
      %p55 = scmp.ne.s32.totalorder %s44, %s45
      %p56 = scmp.eq.s32.totalorder %s22, 0
      %p57 = por %p55, %p56
      %p58 = scmp.ne.s32.totalorder %s44, %s45
      %p59 = scmp.eq.s32.totalorder %s23, 1
      %p60 = por %p58, %p59
      %p62 = scmp.ne.s32.totalorder %s45, %s61
      %p63 = scmp.eq.s32.totalorder %s23, 0
      %p64 = por %p62, %p63
      %s65 = sadd.s32 %s24, %s25
      %s66 = sadd.s32 %s36, %s32
      %s67 = ssub.s32 %s65, %s66
      %p68 = scmp.eq.s32.totalorder %s67, 0
      %s70 = sadd.s32 %s69, 1
      %s71 = scalar_select %p68, %s69, %s70
      %p74 = pneg %p68
      %p75 = scmp.eq.s32.totalorder %s17, 1
      %p76 = por %p74, %p75
      %p77 = scmp.ne.s32.totalorder %s69, %s72
      %p78 = scmp.eq.s32.totalorder %s17, 0
      %p79 = por %p77, %p78
      %p80 = scmp.ne.s32.totalorder %s69, %s72
      %p81 = scmp.eq.s32.totalorder %s22, 1
      %p82 = por %p80, %p81
      %p83 = scmp.ne.s32.totalorder %s72, %s73
      %p84 = scmp.eq.s32.totalorder %s22, 0
      %p85 = por %p83, %p84
      %p86 = scmp.ne.s32.totalorder %s72, %s73
      %p87 = scmp.eq.s32.totalorder %s23, 1
      %p88 = por %p86, %p87
      %p90 = scmp.ne.s32.totalorder %s73, %s89
      %p91 = scmp.eq.s32.totalorder %s23, 0
      %p92 = por %p90, %p91
      %s93 = ssub.s32 %s24, %s36
      %p94 = scmp.eq.s32.totalorder %s93, 0
      %s96 = sadd.s32 %s95, 1
      %s97 = scalar_select %p94, %s95, %s96
      %p100 = pneg %p94
      %p101 = scmp.eq.s32.totalorder %s17, 1
      %p102 = por %p100, %p101
      %p103 = scmp.ne.s32.totalorder %s95, %s98
      %p104 = scmp.eq.s32.totalorder %s17, 0
      %p105 = por %p103, %p104
      %p106 = scmp.ne.s32.totalorder %s95, %s98
      %p107 = scmp.eq.s32.totalorder %s22, 1
      %p108 = por %p106, %p107
      %p109 = scmp.ne.s32.totalorder %s98, %s99
      %p110 = scmp.eq.s32.totalorder %s22, 0
      %p111 = por %p109, %p110
      %p112 = scmp.ne.s32.totalorder %s98, %s99
      %p113 = scmp.eq.s32.totalorder %s23, 1
      %p114 = por %p112, %p113
      %p116 = scmp.ne.s32.totalorder %s99, %s115
      %p117 = scmp.eq.s32.totalorder %s23, 0
      %p118 = por %p116, %p117
      %p119 = scmp.le.s32.totalorder 1, %s17
      %p120 = scmp.lt.s32.totalorder %s17, 3
      %p121 = pnand %p119, %p120
      %p122 = pneg %p121
      // Predicated region
      $region9: #{tpu_custom_call.1} parent=5 // pred_check
        _
      $region10: #{tpu_custom_call.1} parent=5 // pred_check_branch
        %124 = sbr.rel (%p121) target = $region12
      $region11: #{tpu_custom_call.1} parent=5 // pred_region
        %s125 = ssub.s32 %s17, 1
      $region12: #{tpu_custom_call.1} parent=5 // pred_fallthru
        _
      %p126 = scmp.lt.s32.totalorder %s17, 2
      // Predicated region
      $region13: #{tpu_custom_call.1} parent=5 // pred_check
        %p127 = pneg %p126
      $region14: #{tpu_custom_call.1} parent=5 // pred_check_branch
        %129 = sbr.rel (%p127) target = $region16
      $region15: #{tpu_custom_call.1} parent=5 // pred_region
        // Predicated region
        $region17: #{tpu_custom_call.1} parent=15 // pred_check
          %p130 = pneg %p51
        $region18: #{tpu_custom_call.1} parent=15 // pred_check_branch
          %132 = sbr.rel (%p130) target = $region20
        $region19: #{tpu_custom_call.1} parent=15 // pred_region
          %s133 = sand.u32 %s41, 1
          %s134 = scalar_lea.sflag [#allocation4], %s133
          %s135 = sand.u32 %s41, 1
          %s136 = smul.addr %s135, 16
          %s137 = scalar_lea.vmem [#allocation3], %s136
          %s138 = sadd.s32 %s24, %s25
          %s139 = smul.u32 2, %s138
          %s141 = ssub.s32 256, 256
          %142 = vsyncadd %s134, %s141
          %s143 = smul.addr %s139, 128
          %s144 = scalar_lea.hbm %s0, %s143
          %s145 = sshll.u32 %s137, 4
          %s146 = int_to_ptr.vmem [resolvable:$true] %s145
          %151 = dma.hbm_to_vmem [thread:$0]  %s144, 256, %s146, %s134, 128, 128, 8
        $region20: #{tpu_custom_call.1} parent=15 // pred_fallthru
          _
        // Predicated region
        $region21: #{tpu_custom_call.1} parent=15 // pred_check
          %p152 = pneg %p79
        $region22: #{tpu_custom_call.1} parent=15 // pred_check_branch
          %154 = sbr.rel (%p152) target = $region24
        $region23: #{tpu_custom_call.1} parent=15 // pred_region
          %s155 = sand.u32 %s69, 1
          %s156 = scalar_lea.sflag [#allocation7], %s155
          %s157 = sand.u32 %s69, 1
          %s158 = smul.addr %s157, 48
          %s159 = scalar_lea.vmem [#allocation6], %s158
          %s160 = sadd.s32 %s24, %s25
          %s161 = smul.u32 2, %s160
          %s163 = ssub.s32 768, 768
          %164 = vsyncadd %s156, %s163
          %s165 = smul.addr %s161, 3
          %s166 = smul.addr %s165, 128
          %s167 = scalar_lea.hbm %s1, %s166
          %s168 = sshll.u32 %s159, 4
          %s169 = int_to_ptr.vmem [resolvable:$true] %s168
          %174 = dma.hbm_to_vmem [thread:$0]  %s167, 768, %s169, %s156, 384, 384, 24
        $region24: #{tpu_custom_call.1} parent=15 // pred_fallthru
          _
      $region16: #{tpu_custom_call.1} parent=5 // pred_fallthru
        _
      %p175 = scmp.le.s32.totalorder 1, %s17
      %p176 = scmp.lt.s32.totalorder %s17, 3
      %p177 = pnand %p175, %p176
      %p178 = pneg %p177
      // Predicated region
      $region25: #{tpu_custom_call.1} parent=5 // pred_check
        _
      $region26: #{tpu_custom_call.1} parent=5 // pred_check_branch
        %180 = sbr.rel (%p177) target = $region28
      $region27: #{tpu_custom_call.1} parent=5 // pred_region
        %s181 = ssub.s32 %s17, 1
        %s182 = sand.u32 %s44, 1
        %s183 = scalar_lea.sflag [#allocation4], %s182
        %s184 = sand.u32 %s44, 1
        %s185 = smul.addr %s184, 16
        %s186 = scalar_lea.vmem [#allocation3], %s185
        // Predicated region
        $region29: #{tpu_custom_call.1} parent=27 // pred_check
          %p187 = pneg %p57
        $region30: #{tpu_custom_call.1} parent=27 // pred_check_branch
          %189 = sbr.rel (%p187) target = $region32
        $region31: #{tpu_custom_call.1} parent=27 // pred_region
          %190 = dma.done %s183, 256
        $region32: #{tpu_custom_call.1} parent=27 // pred_fallthru
          _
        %s191 = sand.u32 %s72, 1
        %s192 = scalar_lea.sflag [#allocation7], %s191
        %s193 = sand.u32 %s72, 1
        %s194 = smul.addr %s193, 48
        %s195 = scalar_lea.vmem [#allocation6], %s194
        // Predicated region
        $region33: #{tpu_custom_call.1} parent=27 // pred_check
          %p196 = pneg %p85
        $region34: #{tpu_custom_call.1} parent=27 // pred_check_branch
          %198 = sbr.rel (%p196) target = $region36
        $region35: #{tpu_custom_call.1} parent=27 // pred_region
          %199 = dma.done %s192, 768
        $region36: #{tpu_custom_call.1} parent=27 // pred_fallthru
          _
        %s200 = sand.u32 %s44, 1
        %s201 = scalar_lea.sflag [#allocation4], %s200
        %s202 = sand.u32 %s44, 1
        %s203 = smul.addr %s202, 16
        %s204 = scalar_lea.vmem [#allocation3], %s203
        %p205 = pneg %p57
        %p206 = pneg %p54
        %s207 = sand.u32 %s72, 1
        %s208 = scalar_lea.sflag [#allocation7], %s207
        %s209 = sand.u32 %s72, 1
        %s210 = smul.addr %s209, 48
        %s211 = scalar_lea.vmem [#allocation6], %s210
        %p212 = pneg %p85
        %p213 = pneg %p82
        %p214 = pneg %p111
        %p215 = pneg %p108
        %s216 = sand.u32 %s98, 1
        %s217 = scalar_lea.sflag [#allocation5], %s216
        %s218 = sand.u32 %s98, 1
        %s219 = smul.addr %s218, 6
        %s220 = scalar_lea.vmem [#allocation8], %s219
        %s221 = sadd.s32 %s26, %s27
        %s222 = smul.u32 2, %s221
        %s223 = sadd.s32 %s26, %s27
        %s224 = smul.u32 2, %s223
        %p225 = scmp.eq.s32.totalorder %s27, 0
        // Predicated region
        $region37: #{tpu_custom_call.1} parent=27 // pred_check
          %p226 = pneg %p225
        $region38: #{tpu_custom_call.1} parent=27 // pred_check_branch
          %228 = sbr.rel (%p226) target = $region40
        $region39: #{tpu_custom_call.1} parent=27 // pred_region
          %v229 = vlaneseq
          %vm230 = vcmp.ge.s32.totalorder %v229, 0
          %vm231 = vcmp.lt.s32.totalorder %v229, 384
          %vm232 = vmand %vm230, %vm231
          %233 = vst.msk [vmem:[%s220] sm:$0x7] %vm232, 0.0
          %234 = vst.msk [vmem:[%s220 + $0x3] sm:$0x7] %vm232, 0.0
          %v235 = vlaneseq
          %v236 = vshrl.u32 %v235, 7
          %v237 = vadd.s32 %v236, 8
          %v238 = vadd.s32 %v236, 16
          %v239 = vadd.s32 %v236, 24
          %v240 = vadd.s32 %v236, 32
          %v241 = vadd.s32 %v236, 40
          %v242 = vadd.s32 %v236, 48
          %v243 = vadd.s32 %v236, 56
          %v244 = vadd.s32 %v236, 64
          %v245 = vadd.s32 %v236, 72
          %v246 = vadd.s32 %v236, 80
          %v247 = vadd.s32 %v236, 88
          %v248 = vadd.s32 %v236, 96
          %v249 = vadd.s32 %v236, 104
          %v250 = vadd.s32 %v236, 112
          %v251 = vadd.s32 %v236, 120
          %v252 = vlaneseq
          %v253 = vand.u32 %v252, 127
          %v254 = vadd.s32 %v253, 128
          %v255 = vadd.s32 %v253, 256
          %v256 = vmul.u32 %v236, 3
          %v257 = vmul.u32 %v237, 3
          %v258 = vmul.u32 %v238, 3
          %v259 = vmul.u32 %v239, 3
          %v260 = vmul.u32 %v240, 3
          %v261 = vmul.u32 %v241, 3
          %v262 = vmul.u32 %v242, 3
          %v263 = vmul.u32 %v243, 3
          %v264 = vmul.u32 %v244, 3
          %v265 = vmul.u32 %v245, 3
          %v266 = vmul.u32 %v246, 3
          %v267 = vmul.u32 %v247, 3
          %v268 = vmul.u32 %v248, 3
          %v269 = vmul.u32 %v249, 3
          %v270 = vmul.u32 %v250, 3
          %v271 = vmul.u32 %v251, 3
          %vm272 = vcmp.ge.s32.totalorder %v253, %v256
          %vm273 = vcmp.ge.s32.totalorder %v254, %v256
          %vm274 = vcmp.ge.s32.totalorder %v255, %v256
          %vm275 = vcmp.ge.s32.totalorder %v253, %v257
          %vm276 = vcmp.ge.s32.totalorder %v254, %v257
          %vm277 = vcmp.ge.s32.totalorder %v255, %v257
          %vm278 = vcmp.ge.s32.totalorder %v253, %v258
          %vm279 = vcmp.ge.s32.totalorder %v254, %v258
          %vm280 = vcmp.ge.s32.totalorder %v255, %v258
          %vm281 = vcmp.ge.s32.totalorder %v253, %v259
          %vm282 = vcmp.ge.s32.totalorder %v254, %v259
          %vm283 = vcmp.ge.s32.totalorder %v255, %v259
          %vm284 = vcmp.ge.s32.totalorder %v253, %v260
          %vm285 = vcmp.ge.s32.totalorder %v254, %v260
          %vm286 = vcmp.ge.s32.totalorder %v255, %v260
          %vm287 = vcmp.ge.s32.totalorder %v253, %v261
          %vm288 = vcmp.ge.s32.totalorder %v254, %v261
          %vm289 = vcmp.ge.s32.totalorder %v255, %v261
          %vm290 = vcmp.ge.s32.totalorder %v253, %v262
          %vm291 = vcmp.ge.s32.totalorder %v254, %v262
          %vm292 = vcmp.ge.s32.totalorder %v255, %v262
          %vm293 = vcmp.ge.s32.totalorder %v253, %v263
          %vm294 = vcmp.ge.s32.totalorder %v254, %v263
          %vm295 = vcmp.ge.s32.totalorder %v255, %v263
          %vm296 = vcmp.ge.s32.totalorder %v253, %v264
          %vm297 = vcmp.ge.s32.totalorder %v254, %v264
          %vm298 = vcmp.ge.s32.totalorder %v255, %v264
          %vm299 = vcmp.ge.s32.totalorder %v253, %v265
          %vm300 = vcmp.ge.s32.totalorder %v254, %v265
          %vm301 = vcmp.ge.s32.totalorder %v255, %v265
          %vm302 = vcmp.ge.s32.totalorder %v253, %v266
          %vm303 = vcmp.ge.s32.totalorder %v254, %v266
          %vm304 = vcmp.ge.s32.totalorder %v255, %v266
          %vm305 = vcmp.ge.s32.totalorder %v253, %v267
          %vm306 = vcmp.ge.s32.totalorder %v254, %v267
          %vm307 = vcmp.ge.s32.totalorder %v255, %v267
          %vm308 = vcmp.ge.s32.totalorder %v253, %v268
          %vm309 = vcmp.ge.s32.totalorder %v254, %v268
          %vm310 = vcmp.ge.s32.totalorder %v255, %v268
          %vm311 = vcmp.ge.s32.totalorder %v253, %v269
          %vm312 = vcmp.ge.s32.totalorder %v254, %v269
          %vm313 = vcmp.ge.s32.totalorder %v255, %v269
          %vm314 = vcmp.ge.s32.totalorder %v253, %v270
          %vm315 = vcmp.ge.s32.totalorder %v254, %v270
          %vm316 = vcmp.ge.s32.totalorder %v255, %v270
          %vm317 = vcmp.ge.s32.totalorder %v253, %v271
          %vm318 = vcmp.ge.s32.totalorder %v254, %v271
          %vm319 = vcmp.ge.s32.totalorder %v255, %v271
          %v320 = vadd.s32 %v236, 1
          %v321 = vadd.s32 %v237, 1
          %v322 = vadd.s32 %v238, 1
          %v323 = vadd.s32 %v239, 1
          %v324 = vadd.s32 %v240, 1
          %v325 = vadd.s32 %v241, 1
          %v326 = vadd.s32 %v242, 1
          %v327 = vadd.s32 %v243, 1
          %v328 = vadd.s32 %v244, 1
          %v329 = vadd.s32 %v245, 1
          %v330 = vadd.s32 %v246, 1
          %v331 = vadd.s32 %v247, 1
          %v332 = vadd.s32 %v248, 1
          %v333 = vadd.s32 %v249, 1
          %v334 = vadd.s32 %v250, 1
          %v335 = vadd.s32 %v251, 1
          %v336 = vmul.u32 %v320, 3
          %v337 = vmul.u32 %v321, 3
          %v338 = vmul.u32 %v322, 3
          %v339 = vmul.u32 %v323, 3
          %v340 = vmul.u32 %v324, 3
          %v341 = vmul.u32 %v325, 3
          %v342 = vmul.u32 %v326, 3
          %v343 = vmul.u32 %v327, 3
          %v344 = vmul.u32 %v328, 3
          %v345 = vmul.u32 %v329, 3
          %v346 = vmul.u32 %v330, 3
          %v347 = vmul.u32 %v331, 3
          %v348 = vmul.u32 %v332, 3
          %v349 = vmul.u32 %v333, 3
          %v350 = vmul.u32 %v334, 3
          %v351 = vmul.u32 %v335, 3
          %vm352 = vcmp.lt.s32.totalorder %v253, %v336
          %vm353 = vcmp.lt.s32.totalorder %v254, %v336
          %vm354 = vcmp.lt.s32.totalorder %v255, %v336
          %vm355 = vcmp.lt.s32.totalorder %v253, %v337
          %vm356 = vcmp.lt.s32.totalorder %v254, %v337
          %vm357 = vcmp.lt.s32.totalorder %v255, %v337
          %vm358 = vcmp.lt.s32.totalorder %v253, %v338
          %vm359 = vcmp.lt.s32.totalorder %v254, %v338
          %vm360 = vcmp.lt.s32.totalorder %v255, %v338
          %vm361 = vcmp.lt.s32.totalorder %v253, %v339
          %vm362 = vcmp.lt.s32.totalorder %v254, %v339
          %vm363 = vcmp.lt.s32.totalorder %v255, %v339
          %vm364 = vcmp.lt.s32.totalorder %v253, %v340
          %vm365 = vcmp.lt.s32.totalorder %v254, %v340
          %vm366 = vcmp.lt.s32.totalorder %v255, %v340
          %vm367 = vcmp.lt.s32.totalorder %v253, %v341
          %vm368 = vcmp.lt.s32.totalorder %v254, %v341
          %vm369 = vcmp.lt.s32.totalorder %v255, %v341
          %vm370 = vcmp.lt.s32.totalorder %v253, %v342
          %vm371 = vcmp.lt.s32.totalorder %v254, %v342
          %vm372 = vcmp.lt.s32.totalorder %v255, %v342
          %vm373 = vcmp.lt.s32.totalorder %v253, %v343
          %vm374 = vcmp.lt.s32.totalorder %v254, %v343
          %vm375 = vcmp.lt.s32.totalorder %v255, %v343
          %vm376 = vcmp.lt.s32.totalorder %v253, %v344
          %vm377 = vcmp.lt.s32.totalorder %v254, %v344
          %vm378 = vcmp.lt.s32.totalorder %v255, %v344
          %vm379 = vcmp.lt.s32.totalorder %v253, %v345
          %vm380 = vcmp.lt.s32.totalorder %v254, %v345
          %vm381 = vcmp.lt.s32.totalorder %v255, %v345
          %vm382 = vcmp.lt.s32.totalorder %v253, %v346
          %vm383 = vcmp.lt.s32.totalorder %v254, %v346
          %vm384 = vcmp.lt.s32.totalorder %v255, %v346
          %vm385 = vcmp.lt.s32.totalorder %v253, %v347
          %vm386 = vcmp.lt.s32.totalorder %v254, %v347
          %vm387 = vcmp.lt.s32.totalorder %v255, %v347
          %vm388 = vcmp.lt.s32.totalorder %v253, %v348
          %vm389 = vcmp.lt.s32.totalorder %v254, %v348
          %vm390 = vcmp.lt.s32.totalorder %v255, %v348
          %vm391 = vcmp.lt.s32.totalorder %v253, %v349
          %vm392 = vcmp.lt.s32.totalorder %v254, %v349
          %vm393 = vcmp.lt.s32.totalorder %v255, %v349
          %vm394 = vcmp.lt.s32.totalorder %v253, %v350
          %vm395 = vcmp.lt.s32.totalorder %v254, %v350
          %vm396 = vcmp.lt.s32.totalorder %v255, %v350
          %vm397 = vcmp.lt.s32.totalorder %v253, %v351
          %vm398 = vcmp.lt.s32.totalorder %v254, %v351
          %vm399 = vcmp.lt.s32.totalorder %v255, %v351
          %vm400 = vmand %vm272, %vm352
          %vm401 = vmand %vm273, %vm353
          %vm402 = vmand %vm274, %vm354
          %vm403 = vmand %vm275, %vm355
          %vm404 = vmand %vm276, %vm356
          %vm405 = vmand %vm277, %vm357
          %vm406 = vmand %vm278, %vm358
          %vm407 = vmand %vm279, %vm359
          %vm408 = vmand %vm280, %vm360
          %vm409 = vmand %vm281, %vm361
          %vm410 = vmand %vm282, %vm362
          %vm411 = vmand %vm283, %vm363
          %vm412 = vmand %vm284, %vm364
          %vm413 = vmand %vm285, %vm365
          %vm414 = vmand %vm286, %vm366
          %vm415 = vmand %vm287, %vm367
          %vm416 = vmand %vm288, %vm368
          %vm417 = vmand %vm289, %vm369
          %vm418 = vmand %vm290, %vm370
          %vm419 = vmand %vm291, %vm371
          %vm420 = vmand %vm292, %vm372
          %vm421 = vmand %vm293, %vm373
          %vm422 = vmand %vm294, %vm374
          %vm423 = vmand %vm295, %vm375
          %vm424 = vmand %vm296, %vm376
          %vm425 = vmand %vm297, %vm377
          %vm426 = vmand %vm298, %vm378
          %vm427 = vmand %vm299, %vm379
          %vm428 = vmand %vm300, %vm380
          %vm429 = vmand %vm301, %vm381
          %vm430 = vmand %vm302, %vm382
          %vm431 = vmand %vm303, %vm383
          %vm432 = vmand %vm304, %vm384
          %vm433 = vmand %vm305, %vm385
          %vm434 = vmand %vm306, %vm386
          %vm435 = vmand %vm307, %vm387
          %vm436 = vmand %vm308, %vm388
          %vm437 = vmand %vm309, %vm389
          %vm438 = vmand %vm310, %vm390
          %vm439 = vmand %vm311, %vm391
          %vm440 = vmand %vm312, %vm392
          %vm441 = vmand %vm313, %vm393
          %vm442 = vmand %vm314, %vm394
          %vm443 = vmand %vm315, %vm395
          %vm444 = vmand %vm316, %vm396
          %vm445 = vmand %vm317, %vm397
          %vm446 = vmand %vm318, %vm398
          %vm447 = vmand %vm319, %vm399
          %v448 = vsel %vm400, 1.0, 0.0
          %v449 = vsel %vm401, 1.0, 0.0
          %v450 = vsel %vm402, 1.0, 0.0
          %v451 = vsel %vm403, 1.0, 0.0
          %v452 = vsel %vm404, 1.0, 0.0
          %v453 = vsel %vm405, 1.0, 0.0
          %v454 = vsel %vm406, 1.0, 0.0
          %v455 = vsel %vm407, 1.0, 0.0
          %v456 = vsel %vm408, 1.0, 0.0
          %v457 = vsel %vm409, 1.0, 0.0
          %v458 = vsel %vm410, 1.0, 0.0
          %v459 = vsel %vm411, 1.0, 0.0
          %v460 = vsel %vm412, 1.0, 0.0
          %v461 = vsel %vm413, 1.0, 0.0
          %v462 = vsel %vm414, 1.0, 0.0
          %v463 = vsel %vm415, 1.0, 0.0
          %v464 = vsel %vm416, 1.0, 0.0
          %v465 = vsel %vm417, 1.0, 0.0
          %v466 = vsel %vm418, 1.0, 0.0
          %v467 = vsel %vm419, 1.0, 0.0
          %v468 = vsel %vm420, 1.0, 0.0
          %v469 = vsel %vm421, 1.0, 0.0
          %v470 = vsel %vm422, 1.0, 0.0
          %v471 = vsel %vm423, 1.0, 0.0
          %v472 = vsel %vm424, 1.0, 0.0
          %v473 = vsel %vm425, 1.0, 0.0
          %v474 = vsel %vm426, 1.0, 0.0
          %v475 = vsel %vm427, 1.0, 0.0
          %v476 = vsel %vm428, 1.0, 0.0
          %v477 = vsel %vm429, 1.0, 0.0
          %v478 = vsel %vm430, 1.0, 0.0
          %v479 = vsel %vm431, 1.0, 0.0
          %v480 = vsel %vm432, 1.0, 0.0
          %v481 = vsel %vm433, 1.0, 0.0
          %v482 = vsel %vm434, 1.0, 0.0
          %v483 = vsel %vm435, 1.0, 0.0
          %v484 = vsel %vm436, 1.0, 0.0
          %v485 = vsel %vm437, 1.0, 0.0
          %v486 = vsel %vm438, 1.0, 0.0
          %v487 = vsel %vm439, 1.0, 0.0
          %v488 = vsel %vm440, 1.0, 0.0
          %v489 = vsel %vm441, 1.0, 0.0
          %v490 = vsel %vm442, 1.0, 0.0
          %v491 = vsel %vm443, 1.0, 0.0
          %v492 = vsel %vm444, 1.0, 0.0
          %v493 = vsel %vm445, 1.0, 0.0
          %v494 = vsel %vm446, 1.0, 0.0
          %v495 = vsel %vm447, 1.0, 0.0
          %496 = vst [vmem:[#allocation2] sm:$0xff] %v448
          %497 = vst [vmem:[#allocation2 + $0x8] sm:$0xff] %v449
          %498 = vst [vmem:[#allocation2 + $0x10] sm:$0xff] %v450
          %499 = vst [vmem:[#allocation2 + $0x18] sm:$0xff] %v451
          %500 = vst [vmem:[#allocation2 + $0x20] sm:$0xff] %v452
          %501 = vst [vmem:[#allocation2 + $0x28] sm:$0xff] %v453
          %502 = vst [vmem:[#allocation2 + $0x30] sm:$0xff] %v454
          %503 = vst [vmem:[#allocation2 + $0x38] sm:$0xff] %v455
          %504 = vst [vmem:[#allocation2 + $0x40] sm:$0xff] %v456
          %505 = vst [vmem:[#allocation2 + $0x48] sm:$0xff] %v457
          %506 = vst [vmem:[#allocation2 + $0x50] sm:$0xff] %v458
          %507 = vst [vmem:[#allocation2 + $0x58] sm:$0xff] %v459
          %508 = vst [vmem:[#allocation2 + $0x60] sm:$0xff] %v460
          %509 = vst [vmem:[#allocation2 + $0x68] sm:$0xff] %v461
          %510 = vst [vmem:[#allocation2 + $0x70] sm:$0xff] %v462
          %511 = vst [vmem:[#allocation2 + $0x78] sm:$0xff] %v463
          %512 = vst [vmem:[#allocation2 + $0x80] sm:$0xff] %v464
          %513 = vst [vmem:[#allocation2 + $0x88] sm:$0xff] %v465
          %514 = vst [vmem:[#allocation2 + $0x90] sm:$0xff] %v466
          %515 = vst [vmem:[#allocation2 + $0x98] sm:$0xff] %v467
          %516 = vst [vmem:[#allocation2 + $0xa0] sm:$0xff] %v468
          %517 = vst [vmem:[#allocation2 + $0xa8] sm:$0xff] %v469
          %518 = vst [vmem:[#allocation2 + $0xb0] sm:$0xff] %v470
          %519 = vst [vmem:[#allocation2 + $0xb8] sm:$0xff] %v471
          %520 = vst [vmem:[#allocation2 + $0xc0] sm:$0xff] %v472
          %521 = vst [vmem:[#allocation2 + $0xc8] sm:$0xff] %v473
          %522 = vst [vmem:[#allocation2 + $0xd0] sm:$0xff] %v474
          %523 = vst [vmem:[#allocation2 + $0xd8] sm:$0xff] %v475
          %524 = vst [vmem:[#allocation2 + $0xe0] sm:$0xff] %v476
          %525 = vst [vmem:[#allocation2 + $0xe8] sm:$0xff] %v477
          %526 = vst [vmem:[#allocation2 + $0xf0] sm:$0xff] %v478
          %527 = vst [vmem:[#allocation2 + $0xf8] sm:$0xff] %v479
          %528 = vst [vmem:[#allocation2 + $0x100] sm:$0xff] %v480
          %529 = vst [vmem:[#allocation2 + $0x108] sm:$0xff] %v481
          %530 = vst [vmem:[#allocation2 + $0x110] sm:$0xff] %v482
          %531 = vst [vmem:[#allocation2 + $0x118] sm:$0xff] %v483
          %532 = vst [vmem:[#allocation2 + $0x120] sm:$0xff] %v484
          %533 = vst [vmem:[#allocation2 + $0x128] sm:$0xff] %v485
          %534 = vst [vmem:[#allocation2 + $0x130] sm:$0xff] %v486
          %535 = vst [vmem:[#allocation2 + $0x138] sm:$0xff] %v487
          %536 = vst [vmem:[#allocation2 + $0x140] sm:$0xff] %v488
          %537 = vst [vmem:[#allocation2 + $0x148] sm:$0xff] %v489
          %538 = vst [vmem:[#allocation2 + $0x150] sm:$0xff] %v490
          %539 = vst [vmem:[#allocation2 + $0x158] sm:$0xff] %v491
          %540 = vst [vmem:[#allocation2 + $0x160] sm:$0xff] %v492
          %541 = vst [vmem:[#allocation2 + $0x168] sm:$0xff] %v493
          %542 = vst [vmem:[#allocation2 + $0x170] sm:$0xff] %v494
          %543 = vst [vmem:[#allocation2 + $0x178] sm:$0xff] %v495
        $region40: #{tpu_custom_call.1} parent=27 // pred_fallthru
          _
        %v544 = vld [vmem:[%s186] sm:$0xff]
        %v545 = vld [vmem:[%s186 + $0x8] sm:$0xff]
        %v546 = vld [vmem:[%s195] sm:$0xff]
        %v547 = vld [vmem:[%s195 + $0x8] sm:$0xff]
        %v548 = vld [vmem:[%s195 + $0x10] sm:$0xff]
        %v549 = vld [vmem:[%s195 + $0x18] sm:$0xff]
        %v550 = vld [vmem:[%s195 + $0x20] sm:$0xff]
        %v551 = vld [vmem:[%s195 + $0x28] sm:$0xff]
        %vm552 = vcmp.ne.f32.partialorder %v544, %v544
        %vm553 = vcmp.ne.f32.partialorder %v545, %v545
        %v554 = vsel %vm552, 1e+30, %v544
        %v555 = vsel %vm553, 1e+30, %v545
        %v556 = vld [vmem:[#allocation2] sm:$0xff]
        %v557 = vld [vmem:[#allocation2 + $0x8] sm:$0xff]
        %v558 = vld [vmem:[#allocation2 + $0x10] sm:$0xff]
        %v559 = vld [vmem:[#allocation2 + $0x18] sm:$0xff]
        %v560 = vld [vmem:[#allocation2 + $0x20] sm:$0xff]
        %v561 = vld [vmem:[#allocation2 + $0x28] sm:$0xff]
        %v562 = vld [vmem:[#allocation2 + $0x30] sm:$0xff]
        %v563 = vld [vmem:[#allocation2 + $0x38] sm:$0xff]
        %v564 = vld [vmem:[#allocation2 + $0x40] sm:$0xff]
        %v565 = vld [vmem:[#allocation2 + $0x48] sm:$0xff]
        %v566 = vld [vmem:[#allocation2 + $0x50] sm:$0xff]
        %v567 = vld [vmem:[#allocation2 + $0x58] sm:$0xff]
        %v568 = vld [vmem:[#allocation2 + $0x60] sm:$0xff]
        %v569 = vld [vmem:[#allocation2 + $0x68] sm:$0xff]
        %v570 = vld [vmem:[#allocation2 + $0x70] sm:$0xff]
        %v571 = vld [vmem:[#allocation2 + $0x78] sm:$0xff]
        %v572 = vld [vmem:[#allocation2 + $0x80] sm:$0xff]
        %v573 = vld [vmem:[#allocation2 + $0x88] sm:$0xff]
        %v574 = vld [vmem:[#allocation2 + $0x90] sm:$0xff]
        %v575 = vld [vmem:[#allocation2 + $0x98] sm:$0xff]
        %v576 = vld [vmem:[#allocation2 + $0xa0] sm:$0xff]
        %v577 = vld [vmem:[#allocation2 + $0xa8] sm:$0xff]
        %v578 = vld [vmem:[#allocation2 + $0xb0] sm:$0xff]
        %v579 = vld [vmem:[#allocation2 + $0xb8] sm:$0xff]
        %v580 = vld [vmem:[#allocation2 + $0xc0] sm:$0xff]
        %v581 = vld [vmem:[#allocation2 + $0xc8] sm:$0xff]
        %v582 = vld [vmem:[#allocation2 + $0xd0] sm:$0xff]
        %v583 = vld [vmem:[#allocation2 + $0xd8] sm:$0xff]
        %v584 = vld [vmem:[#allocation2 + $0xe0] sm:$0xff]
        %v585 = vld [vmem:[#allocation2 + $0xe8] sm:$0xff]
        %v586 = vld [vmem:[#allocation2 + $0xf0] sm:$0xff]
        %v587 = vld [vmem:[#allocation2 + $0xf8] sm:$0xff]
        %v588 = vld [vmem:[#allocation2 + $0x100] sm:$0xff]
        %v589 = vld [vmem:[#allocation2 + $0x108] sm:$0xff]
        %v590 = vld [vmem:[#allocation2 + $0x110] sm:$0xff]
        %v591 = vld [vmem:[#allocation2 + $0x118] sm:$0xff]
        %v592 = vld [vmem:[#allocation2 + $0x120] sm:$0xff]
        %v593 = vld [vmem:[#allocation2 + $0x128] sm:$0xff]
        %v594 = vld [vmem:[#allocation2 + $0x130] sm:$0xff]
        %v595 = vld [vmem:[#allocation2 + $0x138] sm:$0xff]
        %v596 = vld [vmem:[#allocation2 + $0x140] sm:$0xff]
        %v597 = vld [vmem:[#allocation2 + $0x148] sm:$0xff]
        %v598 = vld [vmem:[#allocation2 + $0x150] sm:$0xff]
        %v599 = vld [vmem:[#allocation2 + $0x158] sm:$0xff]
        %v600 = vld [vmem:[#allocation2 + $0x160] sm:$0xff]
        %v601 = vld [vmem:[#allocation2 + $0x168] sm:$0xff]
        %v602 = vld [vmem:[#allocation2 + $0x170] sm:$0xff]
        %v603 = vld [vmem:[#allocation2 + $0x178] sm:$0xff]
        %v604 = vand.u32 %v602, 4294901760
        %605 = vmatprep.subr.mxu0 %v604
        %v606 = vand.u32 %v601, 4294901760
        %607 = vmatpush1.msra.mxu0 %v606
        %v608 = vand.u32 %v599, 4294901760
        %609 = vmatprep.subr.mxu0 %v608
        %v610 = vand.u32 %v598, 4294901760
        %611 = vmatpush1.msra.mxu0 %v610
        %v612 = vand.u32 %v596, 4294901760
        %613 = vmatprep.subr.mxu0 %v612
        %v614 = vand.u32 %v595, 4294901760
        %615 = vmatpush1.msra.mxu0 %v614
        %v616 = vand.u32 %v593, 4294901760
        %617 = vmatprep.subr.mxu0 %v616
        %v618 = vand.u32 %v592, 4294901760
        %619 = vmatpush1.msra.mxu0 %v618
        %v620 = vand.u32 %v590, 4294901760
        %621 = vmatprep.subr.mxu0 %v620
        %v622 = vand.u32 %v589, 4294901760
        %623 = vmatpush1.msra.mxu0 %v622
        %v624 = vand.u32 %v587, 4294901760
        %625 = vmatprep.subr.mxu0 %v624
        %v626 = vand.u32 %v586, 4294901760
        %627 = vmatpush1.msra.mxu0 %v626
        %v628 = vand.u32 %v584, 4294901760
        %629 = vmatprep.subr.mxu0 %v628
        %v630 = vand.u32 %v583, 4294901760
        %631 = vmatpush1.msra.mxu0 %v630
        %v632 = vand.u32 %v581, 4294901760
        %633 = vmatprep.subr.mxu0 %v632
        %v634 = vand.u32 %v580, 4294901760
        %635 = vmatpush1.msra.mxu0 %v634
        %v636 = vand.u32 %v578, 4294901760
        %637 = vmatprep.subr.mxu0 %v636
        %v638 = vand.u32 %v577, 4294901760
        %639 = vmatpush1.msra.mxu0 %v638
        %v640 = vand.u32 %v575, 4294901760
        %641 = vmatprep.subr.mxu0 %v640
        %v642 = vand.u32 %v574, 4294901760
        %643 = vmatpush1.msra.mxu0 %v642
        %v644 = vand.u32 %v572, 4294901760
        %645 = vmatprep.subr.mxu0 %v644
        %v646 = vand.u32 %v571, 4294901760
        %647 = vmatpush1.msra.mxu0 %v646
        %v648 = vand.u32 %v569, 4294901760
        %649 = vmatprep.subr.mxu0 %v648
        %v650 = vand.u32 %v568, 4294901760
        %651 = vmatpush1.msra.mxu0 %v650
        %v652 = vand.u32 %v566, 4294901760
        %653 = vmatprep.subr.mxu0 %v652
        %v654 = vand.u32 %v565, 4294901760
        %655 = vmatpush1.msra.mxu0 %v654
        %v656 = vand.u32 %v563, 4294901760
        %657 = vmatprep.subr.mxu0 %v656
        %v658 = vand.u32 %v562, 4294901760
        %659 = vmatpush1.msra.mxu0 %v658
        %v660 = vand.u32 %v560, 4294901760
        %661 = vmatprep.subr.mxu0 %v660
        %v662 = vand.u32 %v559, 4294901760
        %663 = vmatpush1.msra.mxu0 %v662
        %v664 = vand.u32 %v557, 4294901760
        %665 = vmatprep.subr.mxu0 %v664
        %v666 = vand.u32 %v556, 4294901760
        %667 = vmatpush1.msra.mxu0 %v666
        %668 = vmatprep.subr.mxu0 0.0
        %669 = vmatpush2.msra.mxu0 0.0
        %670 = vmatprep.subr.mxu0 0.0
        %671 = vmatpush2.msra.mxu0 0.0
        %672 = vmatprep.subr.mxu0 0.0
        %673 = vmatpush2.msra.mxu0 0.0
        %674 = vmatprep.subr.mxu0 0.0
        %675 = vmatpush2.msra.mxu0 0.0
        %676 = vmatprep.subr.mxu0 0.0
        %677 = vmatpush2.msra.mxu0 0.0
        %678 = vmatprep.subr.mxu0 0.0
        %679 = vmatpush2.msra.mxu0 0.0
        %680 = vmatprep.subr.mxu0 0.0
        %681 = vmatpush2.msra.mxu0 0.0
        %682 = vmatprep.subr.mxu0 0.0
        %683 = vmatpush2.msra.mxu0 0.0
        %684 = vmatprep.subr.mxu0 0.0
        %685 = vmatpush2.msra.mxu0 0.0
        %686 = vmatprep.subr.mxu0 0.0
        %687 = vmatpush2.msra.mxu0 0.0
        %688 = vmatprep.subr.mxu0 0.0
        %689 = vmatpush2.msra.mxu0 0.0
        %690 = vmatprep.subr.mxu0 0.0
        %691 = vmatpush2.msra.mxu0 0.0
        %692 = vmatprep.subr.mxu0 0.0
        %693 = vmatpush2.msra.mxu0 0.0
        %694 = vmatprep.subr.mxu0 0.0
        %695 = vmatpush2.msra.mxu0 0.0
        %696 = vmatprep.subr.mxu0 0.0
        %697 = vmatpush2.msra.mxu0 0.0
        %698 = vmatprep.subr.mxu0 0.0
        %699 = vmatpush2.msra.mxu0 0.0
        %700 = vmatprep.mubr.f32.mxu0 0.0
        %v701 = vand.u32 %v554, 4294901760
        %v702 = vsub.f32 %v554, %v701
        %v703 = vand.u32 %v702, 4294901760
        %v704 = vsub.f32 %v702, %v703
        %v705 = vand.u32 %v704, 4294901760
        %706 = vmatmul.mubr.f32.gmra.mxu0 %v705
        %v707 = vpop.f32.mrf.mxu0
        %v708 = vadd.f32 0.0, %v707
        %v709 = vpop.f32.mrf.mxu0
        %v710 = vadd.f32 0.0, %v709
        %711 = vmatprep.mubr.f32.mxu0 0.0
        %v712 = vand.u32 %v555, 4294901760
        %v713 = vsub.f32 %v555, %v712
        %v714 = vand.u32 %v713, 4294901760
        %v715 = vsub.f32 %v713, %v714
        %v716 = vand.u32 %v715, 4294901760
        %717 = vmatmul.mubr.f32.gmra.mxu0 %v716
        %v718 = vpop.f32.mrf.mxu0
        %v719 = vadd.f32 0.0, %v718
        %v720 = vpop.f32.mrf.mxu0
        %v721 = vadd.f32 0.0, %v720
        %722 = vdwg.mxu0
        %v723 = vand.u32 %v602, 4294901760
        %v724 = vsub.f32 %v602, %v723
        %v725 = vand.u32 %v724, 4294901760
        %v726 = vsub.f32 %v724, %v725
        %v727 = vand.u32 %v726, 4294901760
        %728 = vmatprep.subr.mxu0 %v727
        %v729 = vand.u32 %v601, 4294901760
        %v730 = vsub.f32 %v601, %v729
        %v731 = vand.u32 %v730, 4294901760
        %v732 = vsub.f32 %v730, %v731
        %v733 = vand.u32 %v732, 4294901760
        %734 = vmatpush1.msra.mxu0 %v733
        %v735 = vand.u32 %v599, 4294901760
        %v736 = vsub.f32 %v599, %v735
        %v737 = vand.u32 %v736, 4294901760
        %v738 = vsub.f32 %v736, %v737
        %v739 = vand.u32 %v738, 4294901760
        %740 = vmatprep.subr.mxu0 %v739
        %v741 = vand.u32 %v598, 4294901760
        %v742 = vsub.f32 %v598, %v741
        %v743 = vand.u32 %v742, 4294901760
        %v744 = vsub.f32 %v742, %v743
        %v745 = vand.u32 %v744, 4294901760
        %746 = vmatpush1.msra.mxu0 %v745
        %v747 = vand.u32 %v596, 4294901760
        %v748 = vsub.f32 %v596, %v747
        %v749 = vand.u32 %v748, 4294901760
        %v750 = vsub.f32 %v748, %v749
        %v751 = vand.u32 %v750, 4294901760
        %752 = vmatprep.subr.mxu0 %v751
        %v753 = vand.u32 %v595, 4294901760
        %v754 = vsub.f32 %v595, %v753
        %v755 = vand.u32 %v754, 4294901760
        %v756 = vsub.f32 %v754, %v755
        %v757 = vand.u32 %v756, 4294901760
        %758 = vmatpush1.msra.mxu0 %v757
        %v759 = vand.u32 %v593, 4294901760
        %v760 = vsub.f32 %v593, %v759
        %v761 = vand.u32 %v760, 4294901760
        %v762 = vsub.f32 %v760, %v761
        %v763 = vand.u32 %v762, 4294901760
        %764 = vmatprep.subr.mxu0 %v763
        %v765 = vand.u32 %v592, 4294901760
        %v766 = vsub.f32 %v592, %v765
        %v767 = vand.u32 %v766, 4294901760
        %v768 = vsub.f32 %v766, %v767
        %v769 = vand.u32 %v768, 4294901760
        %770 = vmatpush1.msra.mxu0 %v769
        %v771 = vand.u32 %v590, 4294901760
        %v772 = vsub.f32 %v590, %v771
        %v773 = vand.u32 %v772, 4294901760
        %v774 = vsub.f32 %v772, %v773
        %v775 = vand.u32 %v774, 4294901760
        %776 = vmatprep.subr.mxu0 %v775
        %v777 = vand.u32 %v589, 4294901760
        %v778 = vsub.f32 %v589, %v777
        %v779 = vand.u32 %v778, 4294901760
        %v780 = vsub.f32 %v778, %v779
        %v781 = vand.u32 %v780, 4294901760
        %782 = vmatpush1.msra.mxu0 %v781
        %v783 = vand.u32 %v587, 4294901760
        %v784 = vsub.f32 %v587, %v783
        %v785 = vand.u32 %v784, 4294901760
        %v786 = vsub.f32 %v784, %v785
        %v787 = vand.u32 %v786, 4294901760
        %788 = vmatprep.subr.mxu0 %v787
        %v789 = vand.u32 %v586, 4294901760
        %v790 = vsub.f32 %v586, %v789
        %v791 = vand.u32 %v790, 4294901760
        %v792 = vsub.f32 %v790, %v791
        %v793 = vand.u32 %v792, 4294901760
        %794 = vmatpush1.msra.mxu0 %v793
        %v795 = vand.u32 %v584, 4294901760
        %v796 = vsub.f32 %v584, %v795
        %v797 = vand.u32 %v796, 4294901760
        %v798 = vsub.f32 %v796, %v797
        %v799 = vand.u32 %v798, 4294901760
        %800 = vmatprep.subr.mxu0 %v799
        %v801 = vand.u32 %v583, 4294901760
        %v802 = vsub.f32 %v583, %v801
        %v803 = vand.u32 %v802, 4294901760
        %v804 = vsub.f32 %v802, %v803
        %v805 = vand.u32 %v804, 4294901760
        %806 = vmatpush1.msra.mxu0 %v805
        %v807 = vand.u32 %v581, 4294901760
        %v808 = vsub.f32 %v581, %v807
        %v809 = vand.u32 %v808, 4294901760
        %v810 = vsub.f32 %v808, %v809
        %v811 = vand.u32 %v810, 4294901760
        %812 = vmatprep.subr.mxu0 %v811
        %v813 = vand.u32 %v580, 4294901760
        %v814 = vsub.f32 %v580, %v813
        %v815 = vand.u32 %v814, 4294901760
        %v816 = vsub.f32 %v814, %v815
        %v817 = vand.u32 %v816, 4294901760
        %818 = vmatpush1.msra.mxu0 %v817
        %v819 = vand.u32 %v578, 4294901760
        %v820 = vsub.f32 %v578, %v819
        %v821 = vand.u32 %v820, 4294901760
        %v822 = vsub.f32 %v820, %v821
        %v823 = vand.u32 %v822, 4294901760
        %824 = vmatprep.subr.mxu0 %v823
        %v825 = vand.u32 %v577, 4294901760
        %v826 = vsub.f32 %v577, %v825
        %v827 = vand.u32 %v826, 4294901760
        %v828 = vsub.f32 %v826, %v827
        %v829 = vand.u32 %v828, 4294901760
        %830 = vmatpush1.msra.mxu0 %v829
        %v831 = vand.u32 %v575, 4294901760
        %v832 = vsub.f32 %v575, %v831
        %v833 = vand.u32 %v832, 4294901760
        %v834 = vsub.f32 %v832, %v833
        %v835 = vand.u32 %v834, 4294901760
        %836 = vmatprep.subr.mxu0 %v835
        %v837 = vand.u32 %v574, 4294901760
        %v838 = vsub.f32 %v574, %v837
        %v839 = vand.u32 %v838, 4294901760
        %v840 = vsub.f32 %v838, %v839
        %v841 = vand.u32 %v840, 4294901760
        %842 = vmatpush1.msra.mxu0 %v841
        %v843 = vand.u32 %v572, 4294901760
        %v844 = vsub.f32 %v572, %v843
        %v845 = vand.u32 %v844, 4294901760
        %v846 = vsub.f32 %v844, %v845
        %v847 = vand.u32 %v846, 4294901760
        %848 = vmatprep.subr.mxu0 %v847
        %v849 = vand.u32 %v571, 4294901760
        %v850 = vsub.f32 %v571, %v849
        %v851 = vand.u32 %v850, 4294901760
        %v852 = vsub.f32 %v850, %v851
        %v853 = vand.u32 %v852, 4294901760
        %854 = vmatpush1.msra.mxu0 %v853
        %v855 = vand.u32 %v569, 4294901760
        %v856 = vsub.f32 %v569, %v855
        %v857 = vand.u32 %v856, 4294901760
        %v858 = vsub.f32 %v856, %v857
        %v859 = vand.u32 %v858, 4294901760
        %860 = vmatprep.subr.mxu0 %v859
        %v861 = vand.u32 %v568, 4294901760
        %v862 = vsub.f32 %v568, %v861
        %v863 = vand.u32 %v862, 4294901760
        %v864 = vsub.f32 %v862, %v863
        %v865 = vand.u32 %v864, 4294901760
        %866 = vmatpush1.msra.mxu0 %v865
        %v867 = vand.u32 %v566, 4294901760
        %v868 = vsub.f32 %v566, %v867
        %v869 = vand.u32 %v868, 4294901760
        %v870 = vsub.f32 %v868, %v869
        %v871 = vand.u32 %v870, 4294901760
        %872 = vmatprep.subr.mxu0 %v871
        %v873 = vand.u32 %v565, 4294901760
        %v874 = vsub.f32 %v565, %v873
        %v875 = vand.u32 %v874, 4294901760
        %v876 = vsub.f32 %v874, %v875
        %v877 = vand.u32 %v876, 4294901760
        %878 = vmatpush1.msra.mxu0 %v877
        %v879 = vand.u32 %v563, 4294901760
        %v880 = vsub.f32 %v563, %v879
        %v881 = vand.u32 %v880, 4294901760
        %v882 = vsub.f32 %v880, %v881
        %v883 = vand.u32 %v882, 4294901760
        %884 = vmatprep.subr.mxu0 %v883
        %v885 = vand.u32 %v562, 4294901760
        %v886 = vsub.f32 %v562, %v885
        %v887 = vand.u32 %v886, 4294901760
        %v888 = vsub.f32 %v886, %v887
        %v889 = vand.u32 %v888, 4294901760
        %890 = vmatpush1.msra.mxu0 %v889
        %v891 = vand.u32 %v560, 4294901760
        %v892 = vsub.f32 %v560, %v891
        %v893 = vand.u32 %v892, 4294901760
        %v894 = vsub.f32 %v892, %v893
        %v895 = vand.u32 %v894, 4294901760
        %896 = vmatprep.subr.mxu0 %v895
        %v897 = vand.u32 %v559, 4294901760
        %v898 = vsub.f32 %v559, %v897
        %v899 = vand.u32 %v898, 4294901760
        %v900 = vsub.f32 %v898, %v899
        %v901 = vand.u32 %v900, 4294901760
        %902 = vmatpush1.msra.mxu0 %v901
        %v903 = vand.u32 %v557, 4294901760
        %v904 = vsub.f32 %v557, %v903
        %v905 = vand.u32 %v904, 4294901760
        %v906 = vsub.f32 %v904, %v905
        %v907 = vand.u32 %v906, 4294901760
        %908 = vmatprep.subr.mxu0 %v907
        %v909 = vand.u32 %v556, 4294901760
        %v910 = vsub.f32 %v556, %v909
        %v911 = vand.u32 %v910, 4294901760
        %v912 = vsub.f32 %v910, %v911
        %v913 = vand.u32 %v912, 4294901760
        %914 = vmatpush1.msra.mxu0 %v913
        %915 = vmatprep.subr.mxu0 0.0
        %916 = vmatpush2.msra.mxu0 0.0
        %917 = vmatprep.subr.mxu0 0.0
        %918 = vmatpush2.msra.mxu0 0.0
        %919 = vmatprep.subr.mxu0 0.0
        %920 = vmatpush2.msra.mxu0 0.0
        %921 = vmatprep.subr.mxu0 0.0
        %922 = vmatpush2.msra.mxu0 0.0
        %923 = vmatprep.subr.mxu0 0.0
        %924 = vmatpush2.msra.mxu0 0.0
        %925 = vmatprep.subr.mxu0 0.0
        %926 = vmatpush2.msra.mxu0 0.0
        %927 = vmatprep.subr.mxu0 0.0
        %928 = vmatpush2.msra.mxu0 0.0
        %929 = vmatprep.subr.mxu0 0.0
        %930 = vmatpush2.msra.mxu0 0.0
        %931 = vmatprep.subr.mxu0 0.0
        %932 = vmatpush2.msra.mxu0 0.0
        %933 = vmatprep.subr.mxu0 0.0
        %934 = vmatpush2.msra.mxu0 0.0
        %935 = vmatprep.subr.mxu0 0.0
        %936 = vmatpush2.msra.mxu0 0.0
        %937 = vmatprep.subr.mxu0 0.0
        %938 = vmatpush2.msra.mxu0 0.0
        %939 = vmatprep.subr.mxu0 0.0
        %940 = vmatpush2.msra.mxu0 0.0
        %941 = vmatprep.subr.mxu0 0.0
        %942 = vmatpush2.msra.mxu0 0.0
        %943 = vmatprep.subr.mxu0 0.0
        %944 = vmatpush2.msra.mxu0 0.0
        %945 = vmatprep.subr.mxu0 0.0
        %946 = vmatpush2.msra.mxu0 0.0
        %947 = vmatprep.mubr.f32.mxu0 0.0
        %v948 = vand.u32 %v554, 4294901760
        %949 = vmatmul.mubr.f32.gmra.mxu0 %v948
        %v950 = vpop.f32.mrf.mxu0
        %v951 = vadd.f32 %v708, %v950
        %v952 = vpop.f32.mrf.mxu0
        %v953 = vadd.f32 %v710, %v952
        %954 = vmatprep.mubr.f32.mxu0 0.0
        %v955 = vand.u32 %v555, 4294901760
        %956 = vmatmul.mubr.f32.gmra.mxu0 %v955
        %v957 = vpop.f32.mrf.mxu0
        %v958 = vadd.f32 %v719, %v957
        %v959 = vpop.f32.mrf.mxu0
        %v960 = vadd.f32 %v721, %v959
        %961 = vdwg.mxu0
        %v962 = vand.u32 %v602, 4294901760
        %v963 = vsub.f32 %v602, %v962
        %964 = vmatprep.subr.mxu0 %v963
        %v965 = vand.u32 %v601, 4294901760
        %v966 = vsub.f32 %v601, %v965
        %967 = vmatpush1.msra.mxu0 %v966
        %v968 = vand.u32 %v599, 4294901760
        %v969 = vsub.f32 %v599, %v968
        %970 = vmatprep.subr.mxu0 %v969
        %v971 = vand.u32 %v598, 4294901760
        %v972 = vsub.f32 %v598, %v971
        %973 = vmatpush1.msra.mxu0 %v972
        %v974 = vand.u32 %v596, 4294901760
        %v975 = vsub.f32 %v596, %v974
        %976 = vmatprep.subr.mxu0 %v975
        %v977 = vand.u32 %v595, 4294901760
        %v978 = vsub.f32 %v595, %v977
        %979 = vmatpush1.msra.mxu0 %v978
        %v980 = vand.u32 %v593, 4294901760
        %v981 = vsub.f32 %v593, %v980
        %982 = vmatprep.subr.mxu0 %v981
        %v983 = vand.u32 %v592, 4294901760
        %v984 = vsub.f32 %v592, %v983
        %985 = vmatpush1.msra.mxu0 %v984
        %v986 = vand.u32 %v590, 4294901760
        %v987 = vsub.f32 %v590, %v986
        %988 = vmatprep.subr.mxu0 %v987
        %v989 = vand.u32 %v589, 4294901760
        %v990 = vsub.f32 %v589, %v989
        %991 = vmatpush1.msra.mxu0 %v990
        %v992 = vand.u32 %v587, 4294901760
        %v993 = vsub.f32 %v587, %v992
        %994 = vmatprep.subr.mxu0 %v993
        %v995 = vand.u32 %v586, 4294901760
        %v996 = vsub.f32 %v586, %v995
        %997 = vmatpush1.msra.mxu0 %v996
        %v998 = vand.u32 %v584, 4294901760
        %v999 = vsub.f32 %v584, %v998
        %1000 = vmatprep.subr.mxu0 %v999
        %v1001 = vand.u32 %v583, 4294901760
        %v1002 = vsub.f32 %v583, %v1001
        %1003 = vmatpush1.msra.mxu0 %v1002
        %v1004 = vand.u32 %v581, 4294901760
        %v1005 = vsub.f32 %v581, %v1004
        %1006 = vmatprep.subr.mxu0 %v1005
        %v1007 = vand.u32 %v580, 4294901760
        %v1008 = vsub.f32 %v580, %v1007
        %1009 = vmatpush1.msra.mxu0 %v1008
        %v1010 = vand.u32 %v578, 4294901760
        %v1011 = vsub.f32 %v578, %v1010
        %1012 = vmatprep.subr.mxu0 %v1011
        %v1013 = vand.u32 %v577, 4294901760
        %v1014 = vsub.f32 %v577, %v1013
        %1015 = vmatpush1.msra.mxu0 %v1014
        %v1016 = vand.u32 %v575, 4294901760
        %v1017 = vsub.f32 %v575, %v1016
        %1018 = vmatprep.subr.mxu0 %v1017
        %v1019 = vand.u32 %v574, 4294901760
        %v1020 = vsub.f32 %v574, %v1019
        %1021 = vmatpush1.msra.mxu0 %v1020
        %v1022 = vand.u32 %v572, 4294901760
        %v1023 = vsub.f32 %v572, %v1022
        %1024 = vmatprep.subr.mxu0 %v1023
        %v1025 = vand.u32 %v571, 4294901760
        %v1026 = vsub.f32 %v571, %v1025
        %1027 = vmatpush1.msra.mxu0 %v1026
        %v1028 = vand.u32 %v569, 4294901760
        %v1029 = vsub.f32 %v569, %v1028
        %1030 = vmatprep.subr.mxu0 %v1029
        %v1031 = vand.u32 %v568, 4294901760
        %v1032 = vsub.f32 %v568, %v1031
        %1033 = vmatpush1.msra.mxu0 %v1032
        %v1034 = vand.u32 %v566, 4294901760
        %v1035 = vsub.f32 %v566, %v1034
        %1036 = vmatprep.subr.mxu0 %v1035
        %v1037 = vand.u32 %v565, 4294901760
        %v1038 = vsub.f32 %v565, %v1037
        %1039 = vmatpush1.msra.mxu0 %v1038
        %v1040 = vand.u32 %v563, 4294901760
        %v1041 = vsub.f32 %v563, %v1040
        %1042 = vmatprep.subr.mxu0 %v1041
        %v1043 = vand.u32 %v562, 4294901760
        %v1044 = vsub.f32 %v562, %v1043
        %1045 = vmatpush1.msra.mxu0 %v1044
        %v1046 = vand.u32 %v560, 4294901760
        %v1047 = vsub.f32 %v560, %v1046
        %1048 = vmatprep.subr.mxu0 %v1047
        %v1049 = vand.u32 %v559, 4294901760
        %v1050 = vsub.f32 %v559, %v1049
        %1051 = vmatpush1.msra.mxu0 %v1050
        %v1052 = vand.u32 %v557, 4294901760
        %v1053 = vsub.f32 %v557, %v1052
        %1054 = vmatprep.subr.mxu0 %v1053
        %v1055 = vand.u32 %v556, 4294901760
        %v1056 = vsub.f32 %v556, %v1055
        %1057 = vmatpush1.msra.mxu0 %v1056
        %1058 = vmatprep.subr.mxu0 0.0
        %1059 = vmatpush2.msra.mxu0 0.0
        %1060 = vmatprep.subr.mxu0 0.0
        %1061 = vmatpush2.msra.mxu0 0.0
        %1062 = vmatprep.subr.mxu0 0.0
        %1063 = vmatpush2.msra.mxu0 0.0
        %1064 = vmatprep.subr.mxu0 0.0
        %1065 = vmatpush2.msra.mxu0 0.0
        %1066 = vmatprep.subr.mxu0 0.0
        %1067 = vmatpush2.msra.mxu0 0.0
        %1068 = vmatprep.subr.mxu0 0.0
        %1069 = vmatpush2.msra.mxu0 0.0
        %1070 = vmatprep.subr.mxu0 0.0
        %1071 = vmatpush2.msra.mxu0 0.0
        %1072 = vmatprep.subr.mxu0 0.0
        %1073 = vmatpush2.msra.mxu0 0.0
        %1074 = vmatprep.subr.mxu0 0.0
        %1075 = vmatpush2.msra.mxu0 0.0
        %1076 = vmatprep.subr.mxu0 0.0
        %1077 = vmatpush2.msra.mxu0 0.0
        %1078 = vmatprep.subr.mxu0 0.0
        %1079 = vmatpush2.msra.mxu0 0.0
        %1080 = vmatprep.subr.mxu0 0.0
        %1081 = vmatpush2.msra.mxu0 0.0
        %1082 = vmatprep.subr.mxu0 0.0
        %1083 = vmatpush2.msra.mxu0 0.0
        %1084 = vmatprep.subr.mxu0 0.0
        %1085 = vmatpush2.msra.mxu0 0.0
        %1086 = vmatprep.subr.mxu0 0.0
        %1087 = vmatpush2.msra.mxu0 0.0
        %1088 = vmatprep.subr.mxu0 0.0
        %1089 = vmatpush2.msra.mxu0 0.0
        %1090 = vmatprep.mubr.f32.mxu0 0.0
        %v1091 = vand.u32 %v554, 4294901760
        %v1092 = vsub.f32 %v554, %v1091
        %1093 = vmatmul.mubr.f32.gmra.mxu0 %v1092
        %v1094 = vpop.f32.mrf.mxu0
        %v1095 = vadd.f32 %v951, %v1094
        %v1096 = vpop.f32.mrf.mxu0
        %v1097 = vadd.f32 %v953, %v1096
        %1098 = vmatprep.mubr.f32.mxu0 0.0
        %v1099 = vand.u32 %v555, 4294901760
        %v1100 = vsub.f32 %v555, %v1099
        %1101 = vmatmul.mubr.f32.gmra.mxu0 %v1100
        %v1102 = vpop.f32.mrf.mxu0
        %v1103 = vadd.f32 %v958, %v1102
        %v1104 = vpop.f32.mrf.mxu0
        %v1105 = vadd.f32 %v960, %v1104
        %1106 = vdwg.mxu0
        %v1107 = vand.u32 %v602, 4294901760
        %1108 = vmatprep.subr.mxu0 %v1107
        %v1109 = vand.u32 %v601, 4294901760
        %1110 = vmatpush1.msra.mxu0 %v1109
        %v1111 = vand.u32 %v599, 4294901760
        %1112 = vmatprep.subr.mxu0 %v1111
        %v1113 = vand.u32 %v598, 4294901760
        %1114 = vmatpush1.msra.mxu0 %v1113
        %v1115 = vand.u32 %v596, 4294901760
        %1116 = vmatprep.subr.mxu0 %v1115
        %v1117 = vand.u32 %v595, 4294901760
        %1118 = vmatpush1.msra.mxu0 %v1117
        %v1119 = vand.u32 %v593, 4294901760
        %1120 = vmatprep.subr.mxu0 %v1119
        %v1121 = vand.u32 %v592, 4294901760
        %1122 = vmatpush1.msra.mxu0 %v1121
        %v1123 = vand.u32 %v590, 4294901760
        %1124 = vmatprep.subr.mxu0 %v1123
        %v1125 = vand.u32 %v589, 4294901760
        %1126 = vmatpush1.msra.mxu0 %v1125
        %v1127 = vand.u32 %v587, 4294901760
        %1128 = vmatprep.subr.mxu0 %v1127
        %v1129 = vand.u32 %v586, 4294901760
        %1130 = vmatpush1.msra.mxu0 %v1129
        %v1131 = vand.u32 %v584, 4294901760
        %1132 = vmatprep.subr.mxu0 %v1131
        %v1133 = vand.u32 %v583, 4294901760
        %1134 = vmatpush1.msra.mxu0 %v1133
        %v1135 = vand.u32 %v581, 4294901760
        %1136 = vmatprep.subr.mxu0 %v1135
        %v1137 = vand.u32 %v580, 4294901760
        %1138 = vmatpush1.msra.mxu0 %v1137
        %v1139 = vand.u32 %v578, 4294901760
        %1140 = vmatprep.subr.mxu0 %v1139
        %v1141 = vand.u32 %v577, 4294901760
        %1142 = vmatpush1.msra.mxu0 %v1141
        %v1143 = vand.u32 %v575, 4294901760
        %1144 = vmatprep.subr.mxu0 %v1143
        %v1145 = vand.u32 %v574, 4294901760
        %1146 = vmatpush1.msra.mxu0 %v1145
        %v1147 = vand.u32 %v572, 4294901760
        %1148 = vmatprep.subr.mxu0 %v1147
        %v1149 = vand.u32 %v571, 4294901760
        %1150 = vmatpush1.msra.mxu0 %v1149
        %v1151 = vand.u32 %v569, 4294901760
        %1152 = vmatprep.subr.mxu0 %v1151
        %v1153 = vand.u32 %v568, 4294901760
        %1154 = vmatpush1.msra.mxu0 %v1153
        %v1155 = vand.u32 %v566, 4294901760
        %1156 = vmatprep.subr.mxu0 %v1155
        %v1157 = vand.u32 %v565, 4294901760
        %1158 = vmatpush1.msra.mxu0 %v1157
        %v1159 = vand.u32 %v563, 4294901760
        %1160 = vmatprep.subr.mxu0 %v1159
        %v1161 = vand.u32 %v562, 4294901760
        %1162 = vmatpush1.msra.mxu0 %v1161
        %v1163 = vand.u32 %v560, 4294901760
        %1164 = vmatprep.subr.mxu0 %v1163
        %v1165 = vand.u32 %v559, 4294901760
        %1166 = vmatpush1.msra.mxu0 %v1165
        %v1167 = vand.u32 %v557, 4294901760
        %1168 = vmatprep.subr.mxu0 %v1167
        %v1169 = vand.u32 %v556, 4294901760
        %1170 = vmatpush1.msra.mxu0 %v1169
        %1171 = vmatprep.subr.mxu0 0.0
        %1172 = vmatpush2.msra.mxu0 0.0
        %1173 = vmatprep.subr.mxu0 0.0
        %1174 = vmatpush2.msra.mxu0 0.0
        %1175 = vmatprep.subr.mxu0 0.0
        %1176 = vmatpush2.msra.mxu0 0.0
        %1177 = vmatprep.subr.mxu0 0.0
        %1178 = vmatpush2.msra.mxu0 0.0
        %1179 = vmatprep.subr.mxu0 0.0
        %1180 = vmatpush2.msra.mxu0 0.0
        %1181 = vmatprep.subr.mxu0 0.0
        %1182 = vmatpush2.msra.mxu0 0.0
        %1183 = vmatprep.subr.mxu0 0.0
        %1184 = vmatpush2.msra.mxu0 0.0
        %1185 = vmatprep.subr.mxu0 0.0
        %1186 = vmatpush2.msra.mxu0 0.0
        %1187 = vmatprep.subr.mxu0 0.0
        %1188 = vmatpush2.msra.mxu0 0.0
        %1189 = vmatprep.subr.mxu0 0.0
        %1190 = vmatpush2.msra.mxu0 0.0
        %1191 = vmatprep.subr.mxu0 0.0
        %1192 = vmatpush2.msra.mxu0 0.0
        %1193 = vmatprep.subr.mxu0 0.0
        %1194 = vmatpush2.msra.mxu0 0.0
        %1195 = vmatprep.subr.mxu0 0.0
        %1196 = vmatpush2.msra.mxu0 0.0
        %1197 = vmatprep.subr.mxu0 0.0
        %1198 = vmatpush2.msra.mxu0 0.0
        %1199 = vmatprep.subr.mxu0 0.0
        %1200 = vmatpush2.msra.mxu0 0.0
        %1201 = vmatprep.subr.mxu0 0.0
        %1202 = vmatpush2.msra.mxu0 0.0
        %1203 = vmatprep.mubr.f32.mxu0 0.0
        %v1204 = vand.u32 %v554, 4294901760
        %v1205 = vsub.f32 %v554, %v1204
        %v1206 = vand.u32 %v1205, 4294901760
        %1207 = vmatmul.mubr.f32.gmra.mxu0 %v1206
        %v1208 = vpop.f32.mrf.mxu0
        %v1209 = vadd.f32 %v1095, %v1208
        %v1210 = vpop.f32.mrf.mxu0
        %v1211 = vadd.f32 %v1097, %v1210
        %1212 = vmatprep.mubr.f32.mxu0 0.0
        %v1213 = vand.u32 %v555, 4294901760
        %v1214 = vsub.f32 %v555, %v1213
        %v1215 = vand.u32 %v1214, 4294901760
        %1216 = vmatmul.mubr.f32.gmra.mxu0 %v1215
        %v1217 = vpop.f32.mrf.mxu0
        %v1218 = vadd.f32 %v1103, %v1217
        %v1219 = vpop.f32.mrf.mxu0
        %v1220 = vadd.f32 %v1105, %v1219
        %1221 = vdwg.mxu0
        %v1222 = vand.u32 %v602, 4294901760
        %v1223 = vsub.f32 %v602, %v1222
        %v1224 = vand.u32 %v1223, 4294901760
        %1225 = vmatprep.subr.mxu0 %v1224
        %v1226 = vand.u32 %v601, 4294901760
        %v1227 = vsub.f32 %v601, %v1226
        %v1228 = vand.u32 %v1227, 4294901760
        %1229 = vmatpush1.msra.mxu0 %v1228
        %v1230 = vand.u32 %v599, 4294901760
        %v1231 = vsub.f32 %v599, %v1230
        %v1232 = vand.u32 %v1231, 4294901760
        %1233 = vmatprep.subr.mxu0 %v1232
        %v1234 = vand.u32 %v598, 4294901760
        %v1235 = vsub.f32 %v598, %v1234
        %v1236 = vand.u32 %v1235, 4294901760
        %1237 = vmatpush1.msra.mxu0 %v1236
        %v1238 = vand.u32 %v596, 4294901760
        %v1239 = vsub.f32 %v596, %v1238
        %v1240 = vand.u32 %v1239, 4294901760
        %1241 = vmatprep.subr.mxu0 %v1240
        %v1242 = vand.u32 %v595, 4294901760
        %v1243 = vsub.f32 %v595, %v1242
        %v1244 = vand.u32 %v1243, 4294901760
        %1245 = vmatpush1.msra.mxu0 %v1244
        %v1246 = vand.u32 %v593, 4294901760
        %v1247 = vsub.f32 %v593, %v1246
        %v1248 = vand.u32 %v1247, 4294901760
        %1249 = vmatprep.subr.mxu0 %v1248
        %v1250 = vand.u32 %v592, 4294901760
        %v1251 = vsub.f32 %v592, %v1250
        %v1252 = vand.u32 %v1251, 4294901760
        %1253 = vmatpush1.msra.mxu0 %v1252
        %v1254 = vand.u32 %v590, 4294901760
        %v1255 = vsub.f32 %v590, %v1254
        %v1256 = vand.u32 %v1255, 4294901760
        %1257 = vmatprep.subr.mxu0 %v1256
        %v1258 = vand.u32 %v589, 4294901760
        %v1259 = vsub.f32 %v589, %v1258
        %v1260 = vand.u32 %v1259, 4294901760
        %1261 = vmatpush1.msra.mxu0 %v1260
        %v1262 = vand.u32 %v587, 4294901760
        %v1263 = vsub.f32 %v587, %v1262
        %v1264 = vand.u32 %v1263, 4294901760
        %1265 = vmatprep.subr.mxu0 %v1264
        %v1266 = vand.u32 %v586, 4294901760
        %v1267 = vsub.f32 %v586, %v1266
        %v1268 = vand.u32 %v1267, 4294901760
        %1269 = vmatpush1.msra.mxu0 %v1268
        %v1270 = vand.u32 %v584, 4294901760
        %v1271 = vsub.f32 %v584, %v1270
        %v1272 = vand.u32 %v1271, 4294901760
        %1273 = vmatprep.subr.mxu0 %v1272
        %v1274 = vand.u32 %v583, 4294901760
        %v1275 = vsub.f32 %v583, %v1274
        %v1276 = vand.u32 %v1275, 4294901760
        %1277 = vmatpush1.msra.mxu0 %v1276
        %v1278 = vand.u32 %v581, 4294901760
        %v1279 = vsub.f32 %v581, %v1278
        %v1280 = vand.u32 %v1279, 4294901760
        %1281 = vmatprep.subr.mxu0 %v1280
        %v1282 = vand.u32 %v580, 4294901760
        %v1283 = vsub.f32 %v580, %v1282
        %v1284 = vand.u32 %v1283, 4294901760
        %1285 = vmatpush1.msra.mxu0 %v1284
        %v1286 = vand.u32 %v578, 4294901760
        %v1287 = vsub.f32 %v578, %v1286
        %v1288 = vand.u32 %v1287, 4294901760
        %1289 = vmatprep.subr.mxu0 %v1288
        %v1290 = vand.u32 %v577, 4294901760
        %v1291 = vsub.f32 %v577, %v1290
        %v1292 = vand.u32 %v1291, 4294901760
        %1293 = vmatpush1.msra.mxu0 %v1292
        %v1294 = vand.u32 %v575, 4294901760
        %v1295 = vsub.f32 %v575, %v1294
        %v1296 = vand.u32 %v1295, 4294901760
        %1297 = vmatprep.subr.mxu0 %v1296
        %v1298 = vand.u32 %v574, 4294901760
        %v1299 = vsub.f32 %v574, %v1298
        %v1300 = vand.u32 %v1299, 4294901760
        %1301 = vmatpush1.msra.mxu0 %v1300
        %v1302 = vand.u32 %v572, 4294901760
        %v1303 = vsub.f32 %v572, %v1302
        %v1304 = vand.u32 %v1303, 4294901760
        %1305 = vmatprep.subr.mxu0 %v1304
        %v1306 = vand.u32 %v571, 4294901760
        %v1307 = vsub.f32 %v571, %v1306
        %v1308 = vand.u32 %v1307, 4294901760
        %1309 = vmatpush1.msra.mxu0 %v1308
        %v1310 = vand.u32 %v569, 4294901760
        %v1311 = vsub.f32 %v569, %v1310
        %v1312 = vand.u32 %v1311, 4294901760
        %1313 = vmatprep.subr.mxu0 %v1312
        %v1314 = vand.u32 %v568, 4294901760
        %v1315 = vsub.f32 %v568, %v1314
        %v1316 = vand.u32 %v1315, 4294901760
        %1317 = vmatpush1.msra.mxu0 %v1316
        %v1318 = vand.u32 %v566, 4294901760
        %v1319 = vsub.f32 %v566, %v1318
        %v1320 = vand.u32 %v1319, 4294901760
        %1321 = vmatprep.subr.mxu0 %v1320
        %v1322 = vand.u32 %v565, 4294901760
        %v1323 = vsub.f32 %v565, %v1322
        %v1324 = vand.u32 %v1323, 4294901760
        %1325 = vmatpush1.msra.mxu0 %v1324
        %v1326 = vand.u32 %v563, 4294901760
        %v1327 = vsub.f32 %v563, %v1326
        %v1328 = vand.u32 %v1327, 4294901760
        %1329 = vmatprep.subr.mxu0 %v1328
        %v1330 = vand.u32 %v562, 4294901760
        %v1331 = vsub.f32 %v562, %v1330
        %v1332 = vand.u32 %v1331, 4294901760
        %1333 = vmatpush1.msra.mxu0 %v1332
        %v1334 = vand.u32 %v560, 4294901760
        %v1335 = vsub.f32 %v560, %v1334
        %v1336 = vand.u32 %v1335, 4294901760
        %1337 = vmatprep.subr.mxu0 %v1336
        %v1338 = vand.u32 %v559, 4294901760
        %v1339 = vsub.f32 %v559, %v1338
        %v1340 = vand.u32 %v1339, 4294901760
        %1341 = vmatpush1.msra.mxu0 %v1340
        %v1342 = vand.u32 %v557, 4294901760
        %v1343 = vsub.f32 %v557, %v1342
        %v1344 = vand.u32 %v1343, 4294901760
        %1345 = vmatprep.subr.mxu0 %v1344
        %v1346 = vand.u32 %v556, 4294901760
        %v1347 = vsub.f32 %v556, %v1346
        %v1348 = vand.u32 %v1347, 4294901760
        %1349 = vmatpush1.msra.mxu0 %v1348
        %1350 = vmatprep.subr.mxu0 0.0
        %1351 = vmatpush2.msra.mxu0 0.0
        %1352 = vmatprep.subr.mxu0 0.0
        %1353 = vmatpush2.msra.mxu0 0.0
        %1354 = vmatprep.subr.mxu0 0.0
        %1355 = vmatpush2.msra.mxu0 0.0
        %1356 = vmatprep.subr.mxu0 0.0
        %1357 = vmatpush2.msra.mxu0 0.0
        %1358 = vmatprep.subr.mxu0 0.0
        %1359 = vmatpush2.msra.mxu0 0.0
        %1360 = vmatprep.subr.mxu0 0.0
        %1361 = vmatpush2.msra.mxu0 0.0
        %1362 = vmatprep.subr.mxu0 0.0
        %1363 = vmatpush2.msra.mxu0 0.0
        %1364 = vmatprep.subr.mxu0 0.0
        %1365 = vmatpush2.msra.mxu0 0.0
        %1366 = vmatprep.subr.mxu0 0.0
        %1367 = vmatpush2.msra.mxu0 0.0
        %1368 = vmatprep.subr.mxu0 0.0
        %1369 = vmatpush2.msra.mxu0 0.0
        %1370 = vmatprep.subr.mxu0 0.0
        %1371 = vmatpush2.msra.mxu0 0.0
        %1372 = vmatprep.subr.mxu0 0.0
        %1373 = vmatpush2.msra.mxu0 0.0
        %1374 = vmatprep.subr.mxu0 0.0
        %1375 = vmatpush2.msra.mxu0 0.0
        %1376 = vmatprep.subr.mxu0 0.0
        %1377 = vmatpush2.msra.mxu0 0.0
        %1378 = vmatprep.subr.mxu0 0.0
        %1379 = vmatpush2.msra.mxu0 0.0
        %1380 = vmatprep.subr.mxu0 0.0
        %1381 = vmatpush2.msra.mxu0 0.0
        %1382 = vmatprep.mubr.f32.mxu0 0.0
        %v1383 = vand.u32 %v554, 4294901760
        %1384 = vmatmul.mubr.f32.gmra.mxu0 %v1383
        %v1385 = vpop.f32.mrf.mxu0
        %v1386 = vadd.f32 %v1209, %v1385
        %v1387 = vpop.f32.mrf.mxu0
        %v1388 = vadd.f32 %v1211, %v1387
        %1389 = vmatprep.mubr.f32.mxu0 0.0
        %v1390 = vand.u32 %v555, 4294901760
        %1391 = vmatmul.mubr.f32.gmra.mxu0 %v1390
        %v1392 = vpop.f32.mrf.mxu0
        %v1393 = vadd.f32 %v1218, %v1392
        %v1394 = vpop.f32.mrf.mxu0
        %v1395 = vadd.f32 %v1220, %v1394
        %1396 = vdwg.mxu0
        %v1397 = vand.u32 %v602, 4294901760
        %1398 = vmatprep.subr.mxu0 %v1397
        %v1399 = vand.u32 %v601, 4294901760
        %1400 = vmatpush1.msra.mxu0 %v1399
        %v1401 = vand.u32 %v599, 4294901760
        %1402 = vmatprep.subr.mxu0 %v1401
        %v1403 = vand.u32 %v598, 4294901760
        %1404 = vmatpush1.msra.mxu0 %v1403
        %v1405 = vand.u32 %v596, 4294901760
        %1406 = vmatprep.subr.mxu0 %v1405
        %v1407 = vand.u32 %v595, 4294901760
        %1408 = vmatpush1.msra.mxu0 %v1407
        %v1409 = vand.u32 %v593, 4294901760
        %1410 = vmatprep.subr.mxu0 %v1409
        %v1411 = vand.u32 %v592, 4294901760
        %1412 = vmatpush1.msra.mxu0 %v1411
        %v1413 = vand.u32 %v590, 4294901760
        %1414 = vmatprep.subr.mxu0 %v1413
        %v1415 = vand.u32 %v589, 4294901760
        %1416 = vmatpush1.msra.mxu0 %v1415
        %v1417 = vand.u32 %v587, 4294901760
        %1418 = vmatprep.subr.mxu0 %v1417
        %v1419 = vand.u32 %v586, 4294901760
        %1420 = vmatpush1.msra.mxu0 %v1419
        %v1421 = vand.u32 %v584, 4294901760
        %1422 = vmatprep.subr.mxu0 %v1421
        %v1423 = vand.u32 %v583, 4294901760
        %1424 = vmatpush1.msra.mxu0 %v1423
        %v1425 = vand.u32 %v581, 4294901760
        %1426 = vmatprep.subr.mxu0 %v1425
        %v1427 = vand.u32 %v580, 4294901760
        %1428 = vmatpush1.msra.mxu0 %v1427
        %v1429 = vand.u32 %v578, 4294901760
        %1430 = vmatprep.subr.mxu0 %v1429
        %v1431 = vand.u32 %v577, 4294901760
        %1432 = vmatpush1.msra.mxu0 %v1431
        %v1433 = vand.u32 %v575, 4294901760
        %1434 = vmatprep.subr.mxu0 %v1433
        %v1435 = vand.u32 %v574, 4294901760
        %1436 = vmatpush1.msra.mxu0 %v1435
        %v1437 = vand.u32 %v572, 4294901760
        %1438 = vmatprep.subr.mxu0 %v1437
        %v1439 = vand.u32 %v571, 4294901760
        %1440 = vmatpush1.msra.mxu0 %v1439
        %v1441 = vand.u32 %v569, 4294901760
        %1442 = vmatprep.subr.mxu0 %v1441
        %v1443 = vand.u32 %v568, 4294901760
        %1444 = vmatpush1.msra.mxu0 %v1443
        %v1445 = vand.u32 %v566, 4294901760
        %1446 = vmatprep.subr.mxu0 %v1445
        %v1447 = vand.u32 %v565, 4294901760
        %1448 = vmatpush1.msra.mxu0 %v1447
        %v1449 = vand.u32 %v563, 4294901760
        %1450 = vmatprep.subr.mxu0 %v1449
        %v1451 = vand.u32 %v562, 4294901760
        %1452 = vmatpush1.msra.mxu0 %v1451
        %v1453 = vand.u32 %v560, 4294901760
        %1454 = vmatprep.subr.mxu0 %v1453
        %v1455 = vand.u32 %v559, 4294901760
        %1456 = vmatpush1.msra.mxu0 %v1455
        %v1457 = vand.u32 %v557, 4294901760
        %1458 = vmatprep.subr.mxu0 %v1457
        %v1459 = vand.u32 %v556, 4294901760
        %1460 = vmatpush1.msra.mxu0 %v1459
        %1461 = vmatprep.subr.mxu0 0.0
        %1462 = vmatpush2.msra.mxu0 0.0
        %1463 = vmatprep.subr.mxu0 0.0
        %1464 = vmatpush2.msra.mxu0 0.0
        %1465 = vmatprep.subr.mxu0 0.0
        %1466 = vmatpush2.msra.mxu0 0.0
        %1467 = vmatprep.subr.mxu0 0.0
        %1468 = vmatpush2.msra.mxu0 0.0
        %1469 = vmatprep.subr.mxu0 0.0
        %1470 = vmatpush2.msra.mxu0 0.0
        %1471 = vmatprep.subr.mxu0 0.0
        %1472 = vmatpush2.msra.mxu0 0.0
        %1473 = vmatprep.subr.mxu0 0.0
        %1474 = vmatpush2.msra.mxu0 0.0
        %1475 = vmatprep.subr.mxu0 0.0
        %1476 = vmatpush2.msra.mxu0 0.0
        %1477 = vmatprep.subr.mxu0 0.0
        %1478 = vmatpush2.msra.mxu0 0.0
        %1479 = vmatprep.subr.mxu0 0.0
        %1480 = vmatpush2.msra.mxu0 0.0
        %1481 = vmatprep.subr.mxu0 0.0
        %1482 = vmatpush2.msra.mxu0 0.0
        %1483 = vmatprep.subr.mxu0 0.0
        %1484 = vmatpush2.msra.mxu0 0.0
        %1485 = vmatprep.subr.mxu0 0.0
        %1486 = vmatpush2.msra.mxu0 0.0
        %1487 = vmatprep.subr.mxu0 0.0
        %1488 = vmatpush2.msra.mxu0 0.0
        %1489 = vmatprep.subr.mxu0 0.0
        %1490 = vmatpush2.msra.mxu0 0.0
        %1491 = vmatprep.subr.mxu0 0.0
        %1492 = vmatpush2.msra.mxu0 0.0
        %1493 = vmatprep.mubr.f32.mxu0 0.0
        %v1494 = vand.u32 %v554, 4294901760
        %1495 = vmatmul.mubr.f32.gmra.mxu0 %v1494
        %v1496 = vpop.f32.mrf.mxu0
        %v1497 = vadd.f32 %v1386, %v1496
        %v1498 = vpop.f32.mrf.mxu0
        %v1499 = vadd.f32 %v1388, %v1498
        %1500 = vmatprep.mubr.f32.mxu0 0.0
        %v1501 = vand.u32 %v555, 4294901760
        %1502 = vmatmul.mubr.f32.gmra.mxu0 %v1501
        %v1503 = vpop.f32.mrf.mxu0
        %v1504 = vadd.f32 %v1393, %v1503
        %v1505 = vpop.f32.mrf.mxu0
        %v1506 = vadd.f32 %v1395, %v1505
        %1507 = vdwg.mxu0
        %1508 = vmatprep.subr.mxu0 0.0
        %v1509 = vand.u32 %v603, 4294901760
        %1510 = vmatpush1.msra.mxu0 %v1509
        %1511 = vmatprep.subr.mxu0 0.0
        %v1512 = vand.u32 %v600, 4294901760
        %1513 = vmatpush1.msra.mxu0 %v1512
        %1514 = vmatprep.subr.mxu0 0.0
        %v1515 = vand.u32 %v597, 4294901760
        %1516 = vmatpush1.msra.mxu0 %v1515
        %1517 = vmatprep.subr.mxu0 0.0
        %v1518 = vand.u32 %v594, 4294901760
        %1519 = vmatpush1.msra.mxu0 %v1518
        %1520 = vmatprep.subr.mxu0 0.0
        %v1521 = vand.u32 %v591, 4294901760
        %1522 = vmatpush1.msra.mxu0 %v1521
        %1523 = vmatprep.subr.mxu0 0.0
        %v1524 = vand.u32 %v588, 4294901760
        %1525 = vmatpush1.msra.mxu0 %v1524
        %1526 = vmatprep.subr.mxu0 0.0
        %v1527 = vand.u32 %v585, 4294901760
        %1528 = vmatpush1.msra.mxu0 %v1527
        %1529 = vmatprep.subr.mxu0 0.0
        %v1530 = vand.u32 %v582, 4294901760
        %1531 = vmatpush1.msra.mxu0 %v1530
        %1532 = vmatprep.subr.mxu0 0.0
        %v1533 = vand.u32 %v579, 4294901760
        %1534 = vmatpush1.msra.mxu0 %v1533
        %1535 = vmatprep.subr.mxu0 0.0
        %v1536 = vand.u32 %v576, 4294901760
        %1537 = vmatpush1.msra.mxu0 %v1536
        %1538 = vmatprep.subr.mxu0 0.0
        %v1539 = vand.u32 %v573, 4294901760
        %1540 = vmatpush1.msra.mxu0 %v1539
        %1541 = vmatprep.subr.mxu0 0.0
        %v1542 = vand.u32 %v570, 4294901760
        %1543 = vmatpush1.msra.mxu0 %v1542
        %1544 = vmatprep.subr.mxu0 0.0
        %v1545 = vand.u32 %v567, 4294901760
        %1546 = vmatpush1.msra.mxu0 %v1545
        %1547 = vmatprep.subr.mxu0 0.0
        %v1548 = vand.u32 %v564, 4294901760
        %1549 = vmatpush1.msra.mxu0 %v1548
        %1550 = vmatprep.subr.mxu0 0.0
        %v1551 = vand.u32 %v561, 4294901760
        %1552 = vmatpush1.msra.mxu0 %v1551
        %1553 = vmatprep.subr.mxu0 0.0
        %v1554 = vand.u32 %v558, 4294901760
        %1555 = vmatpush1.msra.mxu0 %v1554
        %1556 = vmatprep.subr.mxu0 0.0
        %1557 = vmatpush2.msra.mxu0 0.0
        %1558 = vmatprep.subr.mxu0 0.0
        %1559 = vmatpush2.msra.mxu0 0.0
        %1560 = vmatprep.subr.mxu0 0.0
        %1561 = vmatpush2.msra.mxu0 0.0
        %1562 = vmatprep.subr.mxu0 0.0
        %1563 = vmatpush2.msra.mxu0 0.0
        %1564 = vmatprep.subr.mxu0 0.0
        %1565 = vmatpush2.msra.mxu0 0.0
        %1566 = vmatprep.subr.mxu0 0.0
        %1567 = vmatpush2.msra.mxu0 0.0
        %1568 = vmatprep.subr.mxu0 0.0
        %1569 = vmatpush2.msra.mxu0 0.0
        %1570 = vmatprep.subr.mxu0 0.0
        %1571 = vmatpush2.msra.mxu0 0.0
        %1572 = vmatprep.subr.mxu0 0.0
        %1573 = vmatpush2.msra.mxu0 0.0
        %1574 = vmatprep.subr.mxu0 0.0
        %1575 = vmatpush2.msra.mxu0 0.0
        %1576 = vmatprep.subr.mxu0 0.0
        %1577 = vmatpush2.msra.mxu0 0.0
        %1578 = vmatprep.subr.mxu0 0.0
        %1579 = vmatpush2.msra.mxu0 0.0
        %1580 = vmatprep.subr.mxu0 0.0
        %1581 = vmatpush2.msra.mxu0 0.0
        %1582 = vmatprep.subr.mxu0 0.0
        %1583 = vmatpush2.msra.mxu0 0.0
        %1584 = vmatprep.subr.mxu0 0.0
        %1585 = vmatpush2.msra.mxu0 0.0
        %1586 = vmatprep.subr.mxu0 0.0
        %1587 = vmatpush2.msra.mxu0 0.0
        %1588 = vmatprep.mubr.f32.mxu0 0.0
        %v1589 = vand.u32 %v554, 4294901760
        %v1590 = vsub.f32 %v554, %v1589
        %v1591 = vand.u32 %v1590, 4294901760
        %v1592 = vsub.f32 %v1590, %v1591
        %v1593 = vand.u32 %v1592, 4294901760
        %1594 = vmatmul.mubr.f32.gmra.mxu0 %v1593
        %v1595 = vpop.f32.mrf.mxu0
        %v1596 = vadd.f32 0.0, %v1595
        %v1597 = vpop.f32.mrf.mxu0
        %1598 = vmatprep.mubr.f32.mxu0 0.0
        %v1599 = vand.u32 %v555, 4294901760
        %v1600 = vsub.f32 %v555, %v1599
        %v1601 = vand.u32 %v1600, 4294901760
        %v1602 = vsub.f32 %v1600, %v1601
        %v1603 = vand.u32 %v1602, 4294901760
        %1604 = vmatmul.mubr.f32.gmra.mxu0 %v1603
        %v1605 = vpop.f32.mrf.mxu0
        %v1606 = vadd.f32 0.0, %v1605
        %v1607 = vpop.f32.mrf.mxu0
        %1608 = vdwg.mxu0
        %1609 = vmatprep.subr.mxu0 0.0
        %v1610 = vand.u32 %v603, 4294901760
        %v1611 = vsub.f32 %v603, %v1610
        %v1612 = vand.u32 %v1611, 4294901760
        %v1613 = vsub.f32 %v1611, %v1612
        %v1614 = vand.u32 %v1613, 4294901760
        %1615 = vmatpush1.msra.mxu0 %v1614
        %1616 = vmatprep.subr.mxu0 0.0
        %v1617 = vand.u32 %v600, 4294901760
        %v1618 = vsub.f32 %v600, %v1617
        %v1619 = vand.u32 %v1618, 4294901760
        %v1620 = vsub.f32 %v1618, %v1619
        %v1621 = vand.u32 %v1620, 4294901760
        %1622 = vmatpush1.msra.mxu0 %v1621
        %1623 = vmatprep.subr.mxu0 0.0
        %v1624 = vand.u32 %v597, 4294901760
        %v1625 = vsub.f32 %v597, %v1624
        %v1626 = vand.u32 %v1625, 4294901760
        %v1627 = vsub.f32 %v1625, %v1626
        %v1628 = vand.u32 %v1627, 4294901760
        %1629 = vmatpush1.msra.mxu0 %v1628
        %1630 = vmatprep.subr.mxu0 0.0
        %v1631 = vand.u32 %v594, 4294901760
        %v1632 = vsub.f32 %v594, %v1631
        %v1633 = vand.u32 %v1632, 4294901760
        %v1634 = vsub.f32 %v1632, %v1633
        %v1635 = vand.u32 %v1634, 4294901760
        %1636 = vmatpush1.msra.mxu0 %v1635
        %1637 = vmatprep.subr.mxu0 0.0
        %v1638 = vand.u32 %v591, 4294901760
        %v1639 = vsub.f32 %v591, %v1638
        %v1640 = vand.u32 %v1639, 4294901760
        %v1641 = vsub.f32 %v1639, %v1640
        %v1642 = vand.u32 %v1641, 4294901760
        %1643 = vmatpush1.msra.mxu0 %v1642
        %1644 = vmatprep.subr.mxu0 0.0
        %v1645 = vand.u32 %v588, 4294901760
        %v1646 = vsub.f32 %v588, %v1645
        %v1647 = vand.u32 %v1646, 4294901760
        %v1648 = vsub.f32 %v1646, %v1647
        %v1649 = vand.u32 %v1648, 4294901760
        %1650 = vmatpush1.msra.mxu0 %v1649
        %1651 = vmatprep.subr.mxu0 0.0
        %v1652 = vand.u32 %v585, 4294901760
        %v1653 = vsub.f32 %v585, %v1652
        %v1654 = vand.u32 %v1653, 4294901760
        %v1655 = vsub.f32 %v1653, %v1654
        %v1656 = vand.u32 %v1655, 4294901760
        %1657 = vmatpush1.msra.mxu0 %v1656
        %1658 = vmatprep.subr.mxu0 0.0
        %v1659 = vand.u32 %v582, 4294901760
        %v1660 = vsub.f32 %v582, %v1659
        %v1661 = vand.u32 %v1660, 4294901760
        %v1662 = vsub.f32 %v1660, %v1661
        %v1663 = vand.u32 %v1662, 4294901760
        %1664 = vmatpush1.msra.mxu0 %v1663
        %1665 = vmatprep.subr.mxu0 0.0
        %v1666 = vand.u32 %v579, 4294901760
        %v1667 = vsub.f32 %v579, %v1666
        %v1668 = vand.u32 %v1667, 4294901760
        %v1669 = vsub.f32 %v1667, %v1668
        %v1670 = vand.u32 %v1669, 4294901760
        %1671 = vmatpush1.msra.mxu0 %v1670
        %1672 = vmatprep.subr.mxu0 0.0
        %v1673 = vand.u32 %v576, 4294901760
        %v1674 = vsub.f32 %v576, %v1673
        %v1675 = vand.u32 %v1674, 4294901760
        %v1676 = vsub.f32 %v1674, %v1675
        %v1677 = vand.u32 %v1676, 4294901760
        %1678 = vmatpush1.msra.mxu0 %v1677
        %1679 = vmatprep.subr.mxu0 0.0
        %v1680 = vand.u32 %v573, 4294901760
        %v1681 = vsub.f32 %v573, %v1680
        %v1682 = vand.u32 %v1681, 4294901760
        %v1683 = vsub.f32 %v1681, %v1682
        %v1684 = vand.u32 %v1683, 4294901760
        %1685 = vmatpush1.msra.mxu0 %v1684
        %1686 = vmatprep.subr.mxu0 0.0
        %v1687 = vand.u32 %v570, 4294901760
        %v1688 = vsub.f32 %v570, %v1687
        %v1689 = vand.u32 %v1688, 4294901760
        %v1690 = vsub.f32 %v1688, %v1689
        %v1691 = vand.u32 %v1690, 4294901760
        %1692 = vmatpush1.msra.mxu0 %v1691
        %1693 = vmatprep.subr.mxu0 0.0
        %v1694 = vand.u32 %v567, 4294901760
        %v1695 = vsub.f32 %v567, %v1694
        %v1696 = vand.u32 %v1695, 4294901760
        %v1697 = vsub.f32 %v1695, %v1696
        %v1698 = vand.u32 %v1697, 4294901760
        %1699 = vmatpush1.msra.mxu0 %v1698
        %1700 = vmatprep.subr.mxu0 0.0
        %v1701 = vand.u32 %v564, 4294901760
        %v1702 = vsub.f32 %v564, %v1701
        %v1703 = vand.u32 %v1702, 4294901760
        %v1704 = vsub.f32 %v1702, %v1703
        %v1705 = vand.u32 %v1704, 4294901760
        %1706 = vmatpush1.msra.mxu0 %v1705
        %1707 = vmatprep.subr.mxu0 0.0
        %v1708 = vand.u32 %v561, 4294901760
        %v1709 = vsub.f32 %v561, %v1708
        %v1710 = vand.u32 %v1709, 4294901760
        %v1711 = vsub.f32 %v1709, %v1710
        %v1712 = vand.u32 %v1711, 4294901760
        %1713 = vmatpush1.msra.mxu0 %v1712
        %1714 = vmatprep.subr.mxu0 0.0
        %v1715 = vand.u32 %v558, 4294901760
        %v1716 = vsub.f32 %v558, %v1715
        %v1717 = vand.u32 %v1716, 4294901760
        %v1718 = vsub.f32 %v1716, %v1717
        %v1719 = vand.u32 %v1718, 4294901760
        %1720 = vmatpush1.msra.mxu0 %v1719
        %1721 = vmatprep.subr.mxu0 0.0
        %1722 = vmatpush2.msra.mxu0 0.0
        %1723 = vmatprep.subr.mxu0 0.0
        %1724 = vmatpush2.msra.mxu0 0.0
        %1725 = vmatprep.subr.mxu0 0.0
        %1726 = vmatpush2.msra.mxu0 0.0
        %1727 = vmatprep.subr.mxu0 0.0
        %1728 = vmatpush2.msra.mxu0 0.0
        %1729 = vmatprep.subr.mxu0 0.0
        %1730 = vmatpush2.msra.mxu0 0.0
        %1731 = vmatprep.subr.mxu0 0.0
        %1732 = vmatpush2.msra.mxu0 0.0
        %1733 = vmatprep.subr.mxu0 0.0
        %1734 = vmatpush2.msra.mxu0 0.0
        %1735 = vmatprep.subr.mxu0 0.0
        %1736 = vmatpush2.msra.mxu0 0.0
        %1737 = vmatprep.subr.mxu0 0.0
        %1738 = vmatpush2.msra.mxu0 0.0
        %1739 = vmatprep.subr.mxu0 0.0
        %1740 = vmatpush2.msra.mxu0 0.0
        %1741 = vmatprep.subr.mxu0 0.0
        %1742 = vmatpush2.msra.mxu0 0.0
        %1743 = vmatprep.subr.mxu0 0.0
        %1744 = vmatpush2.msra.mxu0 0.0
        %1745 = vmatprep.subr.mxu0 0.0
        %1746 = vmatpush2.msra.mxu0 0.0
        %1747 = vmatprep.subr.mxu0 0.0
        %1748 = vmatpush2.msra.mxu0 0.0
        %1749 = vmatprep.subr.mxu0 0.0
        %1750 = vmatpush2.msra.mxu0 0.0
        %1751 = vmatprep.subr.mxu0 0.0
        %1752 = vmatpush2.msra.mxu0 0.0
        %1753 = vmatprep.mubr.f32.mxu0 0.0
        %v1754 = vand.u32 %v554, 4294901760
        %1755 = vmatmul.mubr.f32.gmra.mxu0 %v1754
        %v1756 = vpop.f32.mrf.mxu0
        %v1757 = vadd.f32 %v1596, %v1756
        %v1758 = vpop.f32.mrf.mxu0
        %1759 = vmatprep.mubr.f32.mxu0 0.0
        %v1760 = vand.u32 %v555, 4294901760
        %1761 = vmatmul.mubr.f32.gmra.mxu0 %v1760
        %v1762 = vpop.f32.mrf.mxu0
        %v1763 = vadd.f32 %v1606, %v1762
        %v1764 = vpop.f32.mrf.mxu0
        %1765 = vdwg.mxu0
        %1766 = vmatprep.subr.mxu0 0.0
        %v1767 = vand.u32 %v603, 4294901760
        %v1768 = vsub.f32 %v603, %v1767
        %1769 = vmatpush1.msra.mxu0 %v1768
        %1770 = vmatprep.subr.mxu0 0.0
        %v1771 = vand.u32 %v600, 4294901760
        %v1772 = vsub.f32 %v600, %v1771
        %1773 = vmatpush1.msra.mxu0 %v1772
        %1774 = vmatprep.subr.mxu0 0.0
        %v1775 = vand.u32 %v597, 4294901760
        %v1776 = vsub.f32 %v597, %v1775
        %1777 = vmatpush1.msra.mxu0 %v1776
        %1778 = vmatprep.subr.mxu0 0.0
        %v1779 = vand.u32 %v594, 4294901760
        %v1780 = vsub.f32 %v594, %v1779
        %1781 = vmatpush1.msra.mxu0 %v1780
        %1782 = vmatprep.subr.mxu0 0.0
        %v1783 = vand.u32 %v591, 4294901760
        %v1784 = vsub.f32 %v591, %v1783
        %1785 = vmatpush1.msra.mxu0 %v1784
        %1786 = vmatprep.subr.mxu0 0.0
        %v1787 = vand.u32 %v588, 4294901760
        %v1788 = vsub.f32 %v588, %v1787
        %1789 = vmatpush1.msra.mxu0 %v1788
        %1790 = vmatprep.subr.mxu0 0.0
        %v1791 = vand.u32 %v585, 4294901760
        %v1792 = vsub.f32 %v585, %v1791
        %1793 = vmatpush1.msra.mxu0 %v1792
        %1794 = vmatprep.subr.mxu0 0.0
        %v1795 = vand.u32 %v582, 4294901760
        %v1796 = vsub.f32 %v582, %v1795
        %1797 = vmatpush1.msra.mxu0 %v1796
        %1798 = vmatprep.subr.mxu0 0.0
        %v1799 = vand.u32 %v579, 4294901760
        %v1800 = vsub.f32 %v579, %v1799
        %1801 = vmatpush1.msra.mxu0 %v1800
        %1802 = vmatprep.subr.mxu0 0.0
        %v1803 = vand.u32 %v576, 4294901760
        %v1804 = vsub.f32 %v576, %v1803
        %1805 = vmatpush1.msra.mxu0 %v1804
        %1806 = vmatprep.subr.mxu0 0.0
        %v1807 = vand.u32 %v573, 4294901760
        %v1808 = vsub.f32 %v573, %v1807
        %1809 = vmatpush1.msra.mxu0 %v1808
        %1810 = vmatprep.subr.mxu0 0.0
        %v1811 = vand.u32 %v570, 4294901760
        %v1812 = vsub.f32 %v570, %v1811
        %1813 = vmatpush1.msra.mxu0 %v1812
        %1814 = vmatprep.subr.mxu0 0.0
        %v1815 = vand.u32 %v567, 4294901760
        %v1816 = vsub.f32 %v567, %v1815
        %1817 = vmatpush1.msra.mxu0 %v1816
        %1818 = vmatprep.subr.mxu0 0.0
        %v1819 = vand.u32 %v564, 4294901760
        %v1820 = vsub.f32 %v564, %v1819
        %1821 = vmatpush1.msra.mxu0 %v1820
        %1822 = vmatprep.subr.mxu0 0.0
        %v1823 = vand.u32 %v561, 4294901760
        %v1824 = vsub.f32 %v561, %v1823
        %1825 = vmatpush1.msra.mxu0 %v1824
        %1826 = vmatprep.subr.mxu0 0.0
        %v1827 = vand.u32 %v558, 4294901760
        %v1828 = vsub.f32 %v558, %v1827
        %1829 = vmatpush1.msra.mxu0 %v1828
        %1830 = vmatprep.subr.mxu0 0.0
        %1831 = vmatpush2.msra.mxu0 0.0
        %1832 = vmatprep.subr.mxu0 0.0
        %1833 = vmatpush2.msra.mxu0 0.0
        %1834 = vmatprep.subr.mxu0 0.0
        %1835 = vmatpush2.msra.mxu0 0.0
        %1836 = vmatprep.subr.mxu0 0.0
        %1837 = vmatpush2.msra.mxu0 0.0
        %1838 = vmatprep.subr.mxu0 0.0
        %1839 = vmatpush2.msra.mxu0 0.0
        %1840 = vmatprep.subr.mxu0 0.0
        %1841 = vmatpush2.msra.mxu0 0.0
        %1842 = vmatprep.subr.mxu0 0.0
        %1843 = vmatpush2.msra.mxu0 0.0
        %1844 = vmatprep.subr.mxu0 0.0
        %1845 = vmatpush2.msra.mxu0 0.0
        %1846 = vmatprep.subr.mxu0 0.0
        %1847 = vmatpush2.msra.mxu0 0.0
        %1848 = vmatprep.subr.mxu0 0.0
        %1849 = vmatpush2.msra.mxu0 0.0
        %1850 = vmatprep.subr.mxu0 0.0
        %1851 = vmatpush2.msra.mxu0 0.0
        %1852 = vmatprep.subr.mxu0 0.0
        %1853 = vmatpush2.msra.mxu0 0.0
        %1854 = vmatprep.subr.mxu0 0.0
        %1855 = vmatpush2.msra.mxu0 0.0
        %1856 = vmatprep.subr.mxu0 0.0
        %1857 = vmatpush2.msra.mxu0 0.0
        %1858 = vmatprep.subr.mxu0 0.0
        %1859 = vmatpush2.msra.mxu0 0.0
        %1860 = vmatprep.subr.mxu0 0.0
        %1861 = vmatpush2.msra.mxu0 0.0
        %1862 = vmatprep.mubr.f32.mxu0 0.0
        %v1863 = vand.u32 %v554, 4294901760
        %v1864 = vsub.f32 %v554, %v1863
        %1865 = vmatmul.mubr.f32.gmra.mxu0 %v1864
        %v1866 = vpop.f32.mrf.mxu0
        %v1867 = vadd.f32 %v1757, %v1866
        %v1868 = vpop.f32.mrf.mxu0
        %1869 = vmatprep.mubr.f32.mxu0 0.0
        %v1870 = vand.u32 %v555, 4294901760
        %v1871 = vsub.f32 %v555, %v1870
        %1872 = vmatmul.mubr.f32.gmra.mxu0 %v1871
        %v1873 = vpop.f32.mrf.mxu0
        %v1874 = vadd.f32 %v1763, %v1873
        %v1875 = vpop.f32.mrf.mxu0
        %1876 = vdwg.mxu0
        %1877 = vmatprep.subr.mxu0 0.0
        %v1878 = vand.u32 %v603, 4294901760
        %1879 = vmatpush1.msra.mxu0 %v1878
        %1880 = vmatprep.subr.mxu0 0.0
        %v1881 = vand.u32 %v600, 4294901760
        %1882 = vmatpush1.msra.mxu0 %v1881
        %1883 = vmatprep.subr.mxu0 0.0
        %v1884 = vand.u32 %v597, 4294901760
        %1885 = vmatpush1.msra.mxu0 %v1884
        %1886 = vmatprep.subr.mxu0 0.0
        %v1887 = vand.u32 %v594, 4294901760
        %1888 = vmatpush1.msra.mxu0 %v1887
        %1889 = vmatprep.subr.mxu0 0.0
        %v1890 = vand.u32 %v591, 4294901760
        %1891 = vmatpush1.msra.mxu0 %v1890
        %1892 = vmatprep.subr.mxu0 0.0
        %v1893 = vand.u32 %v588, 4294901760
        %1894 = vmatpush1.msra.mxu0 %v1893
        %1895 = vmatprep.subr.mxu0 0.0
        %v1896 = vand.u32 %v585, 4294901760
        %1897 = vmatpush1.msra.mxu0 %v1896
        %1898 = vmatprep.subr.mxu0 0.0
        %v1899 = vand.u32 %v582, 4294901760
        %1900 = vmatpush1.msra.mxu0 %v1899
        %1901 = vmatprep.subr.mxu0 0.0
        %v1902 = vand.u32 %v579, 4294901760
        %1903 = vmatpush1.msra.mxu0 %v1902
        %1904 = vmatprep.subr.mxu0 0.0
        %v1905 = vand.u32 %v576, 4294901760
        %1906 = vmatpush1.msra.mxu0 %v1905
        %1907 = vmatprep.subr.mxu0 0.0
        %v1908 = vand.u32 %v573, 4294901760
        %1909 = vmatpush1.msra.mxu0 %v1908
        %1910 = vmatprep.subr.mxu0 0.0
        %v1911 = vand.u32 %v570, 4294901760
        %1912 = vmatpush1.msra.mxu0 %v1911
        %1913 = vmatprep.subr.mxu0 0.0
        %v1914 = vand.u32 %v567, 4294901760
        %1915 = vmatpush1.msra.mxu0 %v1914
        %1916 = vmatprep.subr.mxu0 0.0
        %v1917 = vand.u32 %v564, 4294901760
        %1918 = vmatpush1.msra.mxu0 %v1917
        %1919 = vmatprep.subr.mxu0 0.0
        %v1920 = vand.u32 %v561, 4294901760
        %1921 = vmatpush1.msra.mxu0 %v1920
        %1922 = vmatprep.subr.mxu0 0.0
        %v1923 = vand.u32 %v558, 4294901760
        %1924 = vmatpush1.msra.mxu0 %v1923
        %1925 = vmatprep.subr.mxu0 0.0
        %1926 = vmatpush2.msra.mxu0 0.0
        %1927 = vmatprep.subr.mxu0 0.0
        %1928 = vmatpush2.msra.mxu0 0.0
        %1929 = vmatprep.subr.mxu0 0.0
        %1930 = vmatpush2.msra.mxu0 0.0
        %1931 = vmatprep.subr.mxu0 0.0
        %1932 = vmatpush2.msra.mxu0 0.0
        %1933 = vmatprep.subr.mxu0 0.0
        %1934 = vmatpush2.msra.mxu0 0.0
        %1935 = vmatprep.subr.mxu0 0.0
        %1936 = vmatpush2.msra.mxu0 0.0
        %1937 = vmatprep.subr.mxu0 0.0
        %1938 = vmatpush2.msra.mxu0 0.0
        %1939 = vmatprep.subr.mxu0 0.0
        %1940 = vmatpush2.msra.mxu0 0.0
        %1941 = vmatprep.subr.mxu0 0.0
        %1942 = vmatpush2.msra.mxu0 0.0
        %1943 = vmatprep.subr.mxu0 0.0
        %1944 = vmatpush2.msra.mxu0 0.0
        %1945 = vmatprep.subr.mxu0 0.0
        %1946 = vmatpush2.msra.mxu0 0.0
        %1947 = vmatprep.subr.mxu0 0.0
        %1948 = vmatpush2.msra.mxu0 0.0
        %1949 = vmatprep.subr.mxu0 0.0
        %1950 = vmatpush2.msra.mxu0 0.0
        %1951 = vmatprep.subr.mxu0 0.0
        %1952 = vmatpush2.msra.mxu0 0.0
        %1953 = vmatprep.subr.mxu0 0.0
        %1954 = vmatpush2.msra.mxu0 0.0
        %1955 = vmatprep.subr.mxu0 0.0
        %1956 = vmatpush2.msra.mxu0 0.0
        %1957 = vmatprep.mubr.f32.mxu0 0.0
        %v1958 = vand.u32 %v554, 4294901760
        %v1959 = vsub.f32 %v554, %v1958
        %v1960 = vand.u32 %v1959, 4294901760
        %1961 = vmatmul.mubr.f32.gmra.mxu0 %v1960
        %v1962 = vpop.f32.mrf.mxu0
        %v1963 = vadd.f32 %v1867, %v1962
        %v1964 = vpop.f32.mrf.mxu0
        %1965 = vmatprep.mubr.f32.mxu0 0.0
        %v1966 = vand.u32 %v555, 4294901760
        %v1967 = vsub.f32 %v555, %v1966
        %v1968 = vand.u32 %v1967, 4294901760
        %1969 = vmatmul.mubr.f32.gmra.mxu0 %v1968
        %v1970 = vpop.f32.mrf.mxu0
        %v1971 = vadd.f32 %v1874, %v1970
        %v1972 = vpop.f32.mrf.mxu0
        %1973 = vdwg.mxu0
        %1974 = vmatprep.subr.mxu0 0.0
        %v1975 = vand.u32 %v603, 4294901760
        %v1976 = vsub.f32 %v603, %v1975
        %v1977 = vand.u32 %v1976, 4294901760
        %1978 = vmatpush1.msra.mxu0 %v1977
        %1979 = vmatprep.subr.mxu0 0.0
        %v1980 = vand.u32 %v600, 4294901760
        %v1981 = vsub.f32 %v600, %v1980
        %v1982 = vand.u32 %v1981, 4294901760
        %1983 = vmatpush1.msra.mxu0 %v1982
        %1984 = vmatprep.subr.mxu0 0.0
        %v1985 = vand.u32 %v597, 4294901760
        %v1986 = vsub.f32 %v597, %v1985
        %v1987 = vand.u32 %v1986, 4294901760
        %1988 = vmatpush1.msra.mxu0 %v1987
        %1989 = vmatprep.subr.mxu0 0.0
        %v1990 = vand.u32 %v594, 4294901760
        %v1991 = vsub.f32 %v594, %v1990
        %v1992 = vand.u32 %v1991, 4294901760
        %1993 = vmatpush1.msra.mxu0 %v1992
        %1994 = vmatprep.subr.mxu0 0.0
        %v1995 = vand.u32 %v591, 4294901760
        %v1996 = vsub.f32 %v591, %v1995
        %v1997 = vand.u32 %v1996, 4294901760
        %1998 = vmatpush1.msra.mxu0 %v1997
        %1999 = vmatprep.subr.mxu0 0.0
        %v2000 = vand.u32 %v588, 4294901760
        %v2001 = vsub.f32 %v588, %v2000
        %v2002 = vand.u32 %v2001, 4294901760
        %2003 = vmatpush1.msra.mxu0 %v2002
        %2004 = vmatprep.subr.mxu0 0.0
        %v2005 = vand.u32 %v585, 4294901760
        %v2006 = vsub.f32 %v585, %v2005
        %v2007 = vand.u32 %v2006, 4294901760
        %2008 = vmatpush1.msra.mxu0 %v2007
        %2009 = vmatprep.subr.mxu0 0.0
        %v2010 = vand.u32 %v582, 4294901760
        %v2011 = vsub.f32 %v582, %v2010
        %v2012 = vand.u32 %v2011, 4294901760
        %2013 = vmatpush1.msra.mxu0 %v2012
        %2014 = vmatprep.subr.mxu0 0.0
        %v2015 = vand.u32 %v579, 4294901760
        %v2016 = vsub.f32 %v579, %v2015
        %v2017 = vand.u32 %v2016, 4294901760
        %2018 = vmatpush1.msra.mxu0 %v2017
        %2019 = vmatprep.subr.mxu0 0.0
        %v2020 = vand.u32 %v576, 4294901760
        %v2021 = vsub.f32 %v576, %v2020
        %v2022 = vand.u32 %v2021, 4294901760
        %2023 = vmatpush1.msra.mxu0 %v2022
        %2024 = vmatprep.subr.mxu0 0.0
        %v2025 = vand.u32 %v573, 4294901760
        %v2026 = vsub.f32 %v573, %v2025
        %v2027 = vand.u32 %v2026, 4294901760
        %2028 = vmatpush1.msra.mxu0 %v2027
        %2029 = vmatprep.subr.mxu0 0.0
        %v2030 = vand.u32 %v570, 4294901760
        %v2031 = vsub.f32 %v570, %v2030
        %v2032 = vand.u32 %v2031, 4294901760
        %2033 = vmatpush1.msra.mxu0 %v2032
        %2034 = vmatprep.subr.mxu0 0.0
        %v2035 = vand.u32 %v567, 4294901760
        %v2036 = vsub.f32 %v567, %v2035
        %v2037 = vand.u32 %v2036, 4294901760
        %2038 = vmatpush1.msra.mxu0 %v2037
        %2039 = vmatprep.subr.mxu0 0.0
        %v2040 = vand.u32 %v564, 4294901760
        %v2041 = vsub.f32 %v564, %v2040
        %v2042 = vand.u32 %v2041, 4294901760
        %2043 = vmatpush1.msra.mxu0 %v2042
        %2044 = vmatprep.subr.mxu0 0.0
        %v2045 = vand.u32 %v561, 4294901760
        %v2046 = vsub.f32 %v561, %v2045
        %v2047 = vand.u32 %v2046, 4294901760
        %2048 = vmatpush1.msra.mxu0 %v2047
        %2049 = vmatprep.subr.mxu0 0.0
        %v2050 = vand.u32 %v558, 4294901760
        %v2051 = vsub.f32 %v558, %v2050
        %v2052 = vand.u32 %v2051, 4294901760
        %2053 = vmatpush1.msra.mxu0 %v2052
        %2054 = vmatprep.subr.mxu0 0.0
        %2055 = vmatpush2.msra.mxu0 0.0
        %2056 = vmatprep.subr.mxu0 0.0
        %2057 = vmatpush2.msra.mxu0 0.0
        %2058 = vmatprep.subr.mxu0 0.0
        %2059 = vmatpush2.msra.mxu0 0.0
        %2060 = vmatprep.subr.mxu0 0.0
        %2061 = vmatpush2.msra.mxu0 0.0
        %2062 = vmatprep.subr.mxu0 0.0
        %2063 = vmatpush2.msra.mxu0 0.0
        %2064 = vmatprep.subr.mxu0 0.0
        %2065 = vmatpush2.msra.mxu0 0.0
        %2066 = vmatprep.subr.mxu0 0.0
        %2067 = vmatpush2.msra.mxu0 0.0
        %2068 = vmatprep.subr.mxu0 0.0
        %2069 = vmatpush2.msra.mxu0 0.0
        %2070 = vmatprep.subr.mxu0 0.0
        %2071 = vmatpush2.msra.mxu0 0.0
        %2072 = vmatprep.subr.mxu0 0.0
        %2073 = vmatpush2.msra.mxu0 0.0
        %2074 = vmatprep.subr.mxu0 0.0
        %2075 = vmatpush2.msra.mxu0 0.0
        %2076 = vmatprep.subr.mxu0 0.0
        %2077 = vmatpush2.msra.mxu0 0.0
        %2078 = vmatprep.subr.mxu0 0.0
        %2079 = vmatpush2.msra.mxu0 0.0
        %2080 = vmatprep.subr.mxu0 0.0
        %2081 = vmatpush2.msra.mxu0 0.0
        %2082 = vmatprep.subr.mxu0 0.0
        %2083 = vmatpush2.msra.mxu0 0.0
        %2084 = vmatprep.subr.mxu0 0.0
        %2085 = vmatpush2.msra.mxu0 0.0
        %2086 = vmatprep.mubr.f32.mxu0 0.0
        %v2087 = vand.u32 %v554, 4294901760
        %2088 = vmatmul.mubr.f32.gmra.mxu0 %v2087
        %v2089 = vpop.f32.mrf.mxu0
        %v2090 = vadd.f32 %v1963, %v2089
        %v2091 = vpop.f32.mrf.mxu0
        %2092 = vmatprep.mubr.f32.mxu0 0.0
        %v2093 = vand.u32 %v555, 4294901760
        %2094 = vmatmul.mubr.f32.gmra.mxu0 %v2093
        %v2095 = vpop.f32.mrf.mxu0
        %v2096 = vadd.f32 %v1971, %v2095
        %v2097 = vpop.f32.mrf.mxu0
        %2098 = vdwg.mxu0
        %2099 = vmatprep.subr.mxu0 0.0
        %v2100 = vand.u32 %v603, 4294901760
        %2101 = vmatpush1.msra.mxu0 %v2100
        %2102 = vmatprep.subr.mxu0 0.0
        %v2103 = vand.u32 %v600, 4294901760
        %2104 = vmatpush1.msra.mxu0 %v2103
        %2105 = vmatprep.subr.mxu0 0.0
        %v2106 = vand.u32 %v597, 4294901760
        %2107 = vmatpush1.msra.mxu0 %v2106
        %2108 = vmatprep.subr.mxu0 0.0
        %v2109 = vand.u32 %v594, 4294901760
        %2110 = vmatpush1.msra.mxu0 %v2109
        %2111 = vmatprep.subr.mxu0 0.0
        %v2112 = vand.u32 %v591, 4294901760
        %2113 = vmatpush1.msra.mxu0 %v2112
        %2114 = vmatprep.subr.mxu0 0.0
        %v2115 = vand.u32 %v588, 4294901760
        %2116 = vmatpush1.msra.mxu0 %v2115
        %2117 = vmatprep.subr.mxu0 0.0
        %v2118 = vand.u32 %v585, 4294901760
        %2119 = vmatpush1.msra.mxu0 %v2118
        %2120 = vmatprep.subr.mxu0 0.0
        %v2121 = vand.u32 %v582, 4294901760
        %2122 = vmatpush1.msra.mxu0 %v2121
        %2123 = vmatprep.subr.mxu0 0.0
        %v2124 = vand.u32 %v579, 4294901760
        %2125 = vmatpush1.msra.mxu0 %v2124
        %2126 = vmatprep.subr.mxu0 0.0
        %v2127 = vand.u32 %v576, 4294901760
        %2128 = vmatpush1.msra.mxu0 %v2127
        %2129 = vmatprep.subr.mxu0 0.0
        %v2130 = vand.u32 %v573, 4294901760
        %2131 = vmatpush1.msra.mxu0 %v2130
        %2132 = vmatprep.subr.mxu0 0.0
        %v2133 = vand.u32 %v570, 4294901760
        %2134 = vmatpush1.msra.mxu0 %v2133
        %2135 = vmatprep.subr.mxu0 0.0
        %v2136 = vand.u32 %v567, 4294901760
        %2137 = vmatpush1.msra.mxu0 %v2136
        %2138 = vmatprep.subr.mxu0 0.0
        %v2139 = vand.u32 %v564, 4294901760
        %2140 = vmatpush1.msra.mxu0 %v2139
        %2141 = vmatprep.subr.mxu0 0.0
        %v2142 = vand.u32 %v561, 4294901760
        %2143 = vmatpush1.msra.mxu0 %v2142
        %2144 = vmatprep.subr.mxu0 0.0
        %v2145 = vand.u32 %v558, 4294901760
        %2146 = vmatpush1.msra.mxu0 %v2145
        %2147 = vmatprep.subr.mxu0 0.0
        %2148 = vmatpush2.msra.mxu0 0.0
        %2149 = vmatprep.subr.mxu0 0.0
        %2150 = vmatpush2.msra.mxu0 0.0
        %2151 = vmatprep.subr.mxu0 0.0
        %2152 = vmatpush2.msra.mxu0 0.0
        %2153 = vmatprep.subr.mxu0 0.0
        %2154 = vmatpush2.msra.mxu0 0.0
        %2155 = vmatprep.subr.mxu0 0.0
        %2156 = vmatpush2.msra.mxu0 0.0
        %2157 = vmatprep.subr.mxu0 0.0
        %2158 = vmatpush2.msra.mxu0 0.0
        %2159 = vmatprep.subr.mxu0 0.0
        %2160 = vmatpush2.msra.mxu0 0.0
        %2161 = vmatprep.subr.mxu0 0.0
        %2162 = vmatpush2.msra.mxu0 0.0
        %2163 = vmatprep.subr.mxu0 0.0
        %2164 = vmatpush2.msra.mxu0 0.0
        %2165 = vmatprep.subr.mxu0 0.0
        %2166 = vmatpush2.msra.mxu0 0.0
        %2167 = vmatprep.subr.mxu0 0.0
        %2168 = vmatpush2.msra.mxu0 0.0
        %2169 = vmatprep.subr.mxu0 0.0
        %2170 = vmatpush2.msra.mxu0 0.0
        %2171 = vmatprep.subr.mxu0 0.0
        %2172 = vmatpush2.msra.mxu0 0.0
        %2173 = vmatprep.subr.mxu0 0.0
        %2174 = vmatpush2.msra.mxu0 0.0
        %2175 = vmatprep.subr.mxu0 0.0
        %2176 = vmatpush2.msra.mxu0 0.0
        %2177 = vmatprep.subr.mxu0 0.0
        %2178 = vmatpush2.msra.mxu0 0.0
        %2179 = vmatprep.mubr.f32.mxu0 0.0
        %v2180 = vand.u32 %v554, 4294901760
        %2181 = vmatmul.mubr.f32.gmra.mxu0 %v2180
        %v2182 = vpop.f32.mrf.mxu0
        %v2183 = vadd.f32 %v2090, %v2182
        %v2184 = vpop.f32.mrf.mxu0
        %2185 = vmatprep.mubr.f32.mxu0 0.0
        %v2186 = vand.u32 %v555, 4294901760
        %2187 = vmatmul.mubr.f32.gmra.mxu0 %v2186
        %v2188 = vpop.f32.mrf.mxu0
        %v2189 = vadd.f32 %v2096, %v2188
        %v2190 = vpop.f32.mrf.mxu0
        %2191 = vdwg.mxu0
        %v2192 = vsub.f32 %v1497, %v546
        %v2193 = vsub.f32 %v1499, %v547
        %v2194 = vsub.f32 %v2183, %v548
        %v2195 = vsub.f32 %v1504, %v549
        %v2196 = vsub.f32 %v1506, %v550
        %v2197 = vsub.f32 %v2189, %v551
        %vm2198 = vcmp.ne.f32.partialorder %v2192, %v2192
        %vm2199 = vcmp.ne.f32.partialorder %v2193, %v2193
        %vm2200 = vcmp.ne.f32.partialorder %v2194, %v2194
        %vm2201 = vcmp.ne.f32.partialorder %v2195, %v2195
        %vm2202 = vcmp.ne.f32.partialorder %v2196, %v2196
        %vm2203 = vcmp.ne.f32.partialorder %v2197, %v2197
        %vm2204 = vcmp.gt.f32.partialorder %v1497, 1e+29
        %vm2205 = vcmp.gt.f32.partialorder %v1499, 1e+29
        %vm2206 = vcmp.gt.f32.partialorder %v2183, 1e+29
        %vm2207 = vcmp.gt.f32.partialorder %v1504, 1e+29
        %vm2208 = vcmp.gt.f32.partialorder %v1506, 1e+29
        %vm2209 = vcmp.gt.f32.partialorder %v2189, 1e+29
        %vm2210 = vmor %vm2198, %vm2204
        %vm2211 = vmor %vm2199, %vm2205
        %vm2212 = vmor %vm2200, %vm2206
        %vm2213 = vmor %vm2201, %vm2207
        %vm2214 = vmor %vm2202, %vm2208
        %vm2215 = vmor %vm2203, %vm2209
        %v2216 = vsel %vm2210, 0.0, %v2192
        %v2217 = vsel %vm2211, 0.0, %v2193
        %v2218 = vsel %vm2212, 0.0, %v2194
        %v2219 = vsel %vm2213, 0.0, %v2195
        %v2220 = vsel %vm2214, 0.0, %v2196
        %v2221 = vsel %vm2215, 0.0, %v2197
        %v2222 = vld [vmem:[%s220] sm:$0x7]
        %v2223 = vand.u32 2147483647, %v2216
        %v2224 = vand.u32 2147483647, %v2217
        %v2225 = vand.u32 2147483647, %v2218
        %v2226 = vand.u32 2147483647, %v2219
        %v2227 = vand.u32 2147483647, %v2220
        %v2228 = vand.u32 2147483647, %v2221
        %v2229 = vadd.f32 %v2223, %v2226
        %v2230 = vrot.slane %v2229, 4
        %v2231 = vadd.f32 %v2229, %v2230
        %v2232 = vrot.slane %v2231, 2
        %v2233 = vadd.f32 %v2231, %v2232
        %v2234 = vrot.slane %v2233, 1
        %v2235 = vadd.f32 %v2233, %v2234
        %v2236 = vadd.f32 %v2224, %v2227
        %v2237 = vrot.slane %v2236, 4
        %v2238 = vadd.f32 %v2236, %v2237
        %v2239 = vrot.slane %v2238, 2
        %v2240 = vadd.f32 %v2238, %v2239
        %v2241 = vrot.slane %v2240, 1
        %v2242 = vadd.f32 %v2240, %v2241
        %v2243 = vadd.f32 %v2225, %v2228
        %v2244 = vrot.slane %v2243, 4
        %v2245 = vadd.f32 %v2243, %v2244
        %v2246 = vrot.slane %v2245, 2
        %v2247 = vadd.f32 %v2245, %v2246
        %v2248 = vrot.slane %v2247, 1
        %v2249 = vadd.f32 %v2247, %v2248
        %v2253 = vcombine.low %v2235, %v2242
        %v2255 = vunpack.c.l.s4 1966171168
        %v2256 = vunpack.c.0.s8 %v2255
        %v2257 = vlaneseq
        %v2258 = vshrl.u32 %v2257, 7
        %v2259 = vsub.s32 %v2256, %v2258
        %v2260 = vrot.slane %v2253, %v2259
        %v2262 = vunpack.c.l.s4 1966171168
        %v2263 = vunpack.c.0.s8 %v2262
        %v2264 = vlaneseq
        %v2265 = vshrl.u32 %v2264, 7
        %v2266 = vsub.s32 %v2263, %v2265
        %v2267 = vrot.slane %v2249, %v2266
        %v2268 = vcombine.low %v2260, %v2267
        %v2270 = vunpack.c.l.s4 1966171168
        %v2271 = vunpack.c.0.s8 %v2270
        %v2272 = vlaneseq
        %v2273 = vshrl.u32 %v2272, 7
        %v2274 = vsub.s32 %v2271, %v2273
        %v2275 = vrot.slane %v2268, %v2274
        %v2277 = vadd.f32 %v2222, %v2275
        %v2278 = vlaneseq
        %vm2279 = vcmp.ge.s32.totalorder %v2278, 0
        %vm2280 = vcmp.lt.s32.totalorder %v2278, 384
        %vm2281 = vmand %vm2279, %vm2280
        %2282 = vst.msk [vmem:[%s220] sm:$0x7] %vm2281, %v2277
        %s2283 = scalar_lea.vmem %s220, 3 [#allocation8]
        %v2284 = vld [vmem:[%s2283] sm:$0x7]
        %v2285 = vadd.f32 %v2216, %v2219
        %v2286 = vrot.slane %v2285, 4
        %v2287 = vadd.f32 %v2285, %v2286
        %v2288 = vrot.slane %v2287, 2
        %v2289 = vadd.f32 %v2287, %v2288
        %v2290 = vrot.slane %v2289, 1
        %v2291 = vadd.f32 %v2289, %v2290
        %v2292 = vadd.f32 %v2217, %v2220
        %v2293 = vrot.slane %v2292, 4
        %v2294 = vadd.f32 %v2292, %v2293
        %v2295 = vrot.slane %v2294, 2
        %v2296 = vadd.f32 %v2294, %v2295
        %v2297 = vrot.slane %v2296, 1
        %v2298 = vadd.f32 %v2296, %v2297
        %v2299 = vadd.f32 %v2218, %v2221
        %v2300 = vrot.slane %v2299, 4
        %v2301 = vadd.f32 %v2299, %v2300
        %v2302 = vrot.slane %v2301, 2
        %v2303 = vadd.f32 %v2301, %v2302
        %v2304 = vrot.slane %v2303, 1
        %v2305 = vadd.f32 %v2303, %v2304
        %v2309 = vcombine.low %v2291, %v2298
        %v2311 = vunpack.c.l.s4 1966171168
        %v2312 = vunpack.c.0.s8 %v2311
        %v2313 = vlaneseq
        %v2314 = vshrl.u32 %v2313, 7
        %v2315 = vsub.s32 %v2312, %v2314
        %v2316 = vrot.slane %v2309, %v2315
        %v2318 = vunpack.c.l.s4 1966171168
        %v2319 = vunpack.c.0.s8 %v2318
        %v2320 = vlaneseq
        %v2321 = vshrl.u32 %v2320, 7
        %v2322 = vsub.s32 %v2319, %v2321
        %v2323 = vrot.slane %v2305, %v2322
        %v2324 = vcombine.low %v2316, %v2323
        %v2326 = vunpack.c.l.s4 1966171168
        %v2327 = vunpack.c.0.s8 %v2326
        %v2328 = vlaneseq
        %v2329 = vshrl.u32 %v2328, 7
        %v2330 = vsub.s32 %v2327, %v2329
        %v2331 = vrot.slane %v2324, %v2330
        %v2333 = vadd.f32 %v2284, %v2331
        %2334 = vst.msk [vmem:[%s2283] sm:$0x7] %vm2281, %v2333
        %s2335 = sand.u32 %s98, 1
        %s2336 = scalar_lea.sflag [#allocation5], %s2335
        %s2337 = sand.u32 %s98, 1
        %s2338 = smul.addr %s2337, 6
        %s2339 = scalar_lea.vmem [#allocation8], %s2338
        // Predicated region
        $region41: #{tpu_custom_call.1} parent=27 // pred_check
          %p2340 = pneg %p108
        $region42: #{tpu_custom_call.1} parent=27 // pred_check_branch
          %2342 = sbr.rel (%p2340) target = $region44
        $region43: #{tpu_custom_call.1} parent=27 // pred_region
          %s2344 = ssub.s32 96, 96
          %2345 = vsyncadd %s2336, %s2344
          %s2346 = smul.addr %s26, 6
          %s2347 = smul.addr %s2346, 16
          %s2348 = scalar_lea.hbm %s2, %s2347
          %s2349 = sshll.u32 %s2339, 4
          %s2350 = int_to_ptr.vmem [resolvable:$true] %s2349
          %2355 = dma.vmem_to_hbm [thread:$0]  %s2350, 96, %s2348, %s2336, 48, 48, 3
        $region44: #{tpu_custom_call.1} parent=27 // pred_fallthru
          _
      $region28: #{tpu_custom_call.1} parent=5 // pred_fallthru
        _
      %p2356 = scmp.le.s32.totalorder 2, %s17
      // Predicated region
      $region45: #{tpu_custom_call.1} parent=5 // pred_check
        %p2357 = pneg %p2356
      $region46: #{tpu_custom_call.1} parent=5 // pred_check_branch
        %2359 = sbr.rel (%p2357) target = $region48
      $region47: #{tpu_custom_call.1} parent=5 // pred_region
        %s2360 = ssub.s32 %s17, 2
        // Predicated region
        $region49: #{tpu_custom_call.1} parent=47 // pred_check
          %p2361 = pneg %p114
        $region50: #{tpu_custom_call.1} parent=47 // pred_check_branch
          %2363 = sbr.rel (%p2361) target = $region52
        $region51: #{tpu_custom_call.1} parent=47 // pred_region
          %s2364 = sand.u32 %s99, 1
          %s2365 = scalar_lea.sflag [#allocation5], %s2364
          %s2366 = sand.u32 %s99, 1
          %s2367 = smul.addr %s2366, 6
          %s2368 = scalar_lea.vmem [#allocation8], %s2367
          %2369 = dma.done %s2365, 96
        $region52: #{tpu_custom_call.1} parent=47 // pred_fallthru
          _
      $region48: #{tpu_custom_call.1} parent=5 // pred_fallthru
        _
    $region6: #{tpu_custom_call.1} parent=1 // loop_footer
      %s21 = sadd.s32 1, %s17
    $region7: #{tpu_custom_call.1} parent=1 // loop_footer_branch
      %16 = sbr.rel target = $region3
    $region8: #{tpu_custom_call.1} parent=1 // loop_exit
      _
    %2370 = vsyncpa [#allocation4], 1
    %s2371 = scalar_lea.sflag [#allocation4], 1
    %2372 = vsyncpa %s2371, 1
    %2373 = vsyncpa [#allocation7], 1
    %s2374 = scalar_lea.sflag [#allocation7], 1
    %2375 = vsyncpa %s2374, 1
    %2376 = vsyncpa [#allocation5], 1
    %s2377 = scalar_lea.sflag [#allocation5], 1
    %2378 = vsyncpa %s2377, 1

</llo_original>
